<compile_context>
chip_gen: v6e
topology: v6e:2x2x1
jax: 0.10.0
libtpu: 0.0.40
codegen_flags: <defaults>
</compile_context>

<pallas_src>
import jax
import jax.numpy as jnp
from jax.experimental import pallas as pl
from jax.experimental.pallas import tpu as pltpu

STATE_SIZE = 67
ACTION_SIZE = 21
HIDDEN = 512
LOG_STD_BOUNDS = (-20.0, 2.0)

HEAD_PAD = 128   # fused head padded 42 -> 128 (lane-dense output slab)
MAX_TB = 1024    # max batch-tile rows (amortizes grid-step overhead)


def sac_actor_kernel(x_ref,
                     w1_ref, b1_ref,
                     w2_ref, b2_ref,
                     w3_ref, b3_ref,
                     wh_ref, bh_ref,
                     out_ref):
    """One batch tile: 3x (Linear+ReLU) + fused mean|log_std head."""
    x = x_ref[...]                                             # (TB, 67) bf16

    h = jnp.dot(x, w1_ref[...], preferred_element_type=jnp.float32) + b1_ref[...]
    h = jnp.maximum(h, 0.0).astype(jnp.bfloat16)
    h = jnp.dot(h, w2_ref[...], preferred_element_type=jnp.float32) + b2_ref[...]
    h = jnp.maximum(h, 0.0).astype(jnp.bfloat16)
    h = jnp.dot(h, w3_ref[...], preferred_element_type=jnp.float32) + b3_ref[...]
    h = jnp.maximum(h, 0.0).astype(jnp.bfloat16)

    # fused heads: cols [0,21) = mean, [21,42) = log_std, rest = zero pad
    head = jnp.dot(h, wh_ref[...], preferred_element_type=jnp.float32) + bh_ref[...]

    col = jax.lax.broadcasted_iota(jnp.int32, head.shape, 1)
    is_std = (col >= ACTION_SIZE) & (col < 2 * ACTION_SIZE)
    std_vals = jnp.exp(jnp.clip(head, LOG_STD_BOUNDS[0], LOG_STD_BOUNDS[1]))
    out_ref[...] = jnp.where(is_std, std_vals, head)           # (TB, 128) f32


def _cdiv(a, b):
    return -(-a // b)


def _round_up(x, m):
    return _cdiv(x, m) * m


def _choose_tiling(B):
    """Return (TB, Bp) with TB a multiple of 16, Bp a multiple of TB.

    - B <= 16: single tile (megacore sharding not worth it).
    - otherwise: >= 2 tiles (v7x: both TensorCores get work), tile <= 1024
      rows, tile count chosen so padding waste is minimal.
    """
    if B <= 16:
        tb = _round_up(max(B, 1), 16)
        return tb, tb
    n_tiles = max(2, _cdiv(B, MAX_TB))
    tb = _round_up(_cdiv(B, n_tiles), 16)
    return tb, n_tiles * tb


def pack_params(params):
    """One-time conversion: bf16 weights, fused & lane-padded head."""
    (w1, b1, w2, b2, w3, b3, wm, bm, ws, bs) = params
    bf = jnp.bfloat16

    wh = jnp.zeros((HIDDEN, HEAD_PAD), bf)
    wh = wh.at[:, :ACTION_SIZE].set(wm.astype(bf))
    wh = wh.at[:, ACTION_SIZE:2 * ACTION_SIZE].set(ws.astype(bf))

    bh = jnp.zeros((1, HEAD_PAD), jnp.float32)
    bh = bh.at[:, :ACTION_SIZE].set(bm)
    bh = bh.at[:, ACTION_SIZE:2 * ACTION_SIZE].set(bs)

    return (w1.astype(bf), b1,
            w2.astype(bf), b2,
            w3.astype(bf), b3,
            wh, bh)


def sac_actor_forward(state, packed):
    """Batch-tiled pallas_call; weights pinned VMEM-resident across tiles."""
    (w1, b1, w2, b2, w3, b3, wh, bh) = packed
    B = state.shape[0]

    TB, Bp = _choose_tiling(B)

    x = state.astype(jnp.bfloat16)
    if Bp != B:
        x = jnp.pad(x, ((0, Bp - B), (0, 0)))   # batch pad only; no feature pad

    def w_spec(shape):
        return pl.BlockSpec(shape, lambda i: (0, 0))   # constant -> resident

    out = pl.pallas_call(
        sac_actor_kernel,
        out_shape=jax.ShapeDtypeStruct((Bp, HEAD_PAD), jnp.float32),
        grid_spec=pltpu.PrefetchScalarGridSpec(
            num_scalar_prefetch=0,
            grid=(Bp // TB,),
            in_specs=[
                pl.BlockSpec((TB, STATE_SIZE), lambda i: (i, 0)),  # state tile
                w_spec((STATE_SIZE, HIDDEN)), w_spec((1, HIDDEN)),
                w_spec((HIDDEN, HIDDEN)), w_spec((1, HIDDEN)),
                w_spec((HIDDEN, HIDDEN)), w_spec((1, HIDDEN)),
                w_spec((HIDDEN, HEAD_PAD)), w_spec((1, HEAD_PAD)),
            ],
            out_specs=pl.BlockSpec((TB, HEAD_PAD), lambda i: (i, 0)),
        ),
        compiler_params=pltpu.CompilerParams(
            dimension_semantics=("parallel",),      # v7x: shard batch over TCs
            vmem_limit_bytes=32 << 20,              # covers TB=1024 fp32 temps
        ),
    )(x, w1, b1, w2, b2, w3, b3, wh, bh)

    out = out[:B]
    mean = out[:, :ACTION_SIZE]
    std = out[:, ACTION_SIZE:2 * ACTION_SIZE]
    return mean, std


def init_params(key):
    """Deterministic synthetic params (same shapes/init style as PyTorch)."""
    dims = [STATE_SIZE, HIDDEN, HIDDEN, HIDDEN]
    params = []
    keys = jax.random.split(key, 5)

    for i in range(3):
        fan_in, fan_out = dims[i], dims[i + 1]
        bound = 1.0 / jnp.sqrt(fan_in)
        kw, kb = jax.random.split(keys[i])
        w = jax.random.uniform(kw, (fan_in, fan_out), jnp.float32, -bound, bound)
        b = jax.random.uniform(kb, (1, fan_out), jnp.float32, -bound, bound)
        params += [w, b]

    for k in keys[3:]:
        fan_in = HIDDEN
        bound = 1.0 / jnp.sqrt(fan_in)
        kw, kb = jax.random.split(k)
        w = jax.random.uniform(kw, (fan_in, ACTION_SIZE), jnp.float32, -bound, bound)
        b = jax.random.uniform(kb, (1, ACTION_SIZE), jnp.float32, -bound, bound)
        params += [w, b]

    return tuple(params)


def sac_actor_reference(state, params):
    """Pure-JAX reference following the same bf16-weight / fp32-accum path.

    Note: vs a true fp32 PyTorch SACActor the bf16-weight path deviates a bit
    more than the 5e-3 tolerance used here; acceptable for RL inference.
    """
    (w1, b1, w2, b2, w3, b3, wm, bm, ws, bs) = params
    bf = jnp.bfloat16

    def lin(x, w, b):
        return jnp.dot(x.astype(bf), w.astype(bf),
                       preferred_element_type=jnp.float32) + b

    h = jnp.maximum(lin(state, w1, b1), 0.0)
    h = jnp.maximum(lin(h, w2, b2), 0.0)
    h = jnp.maximum(lin(h, w3, b3), 0.0)
    mean = lin(h, wm, bm)
    log_std = jnp.clip(lin(h, ws, bs), LOG_STD_BOUNDS[0], LOG_STD_BOUNDS[1])
    return mean, jnp.exp(log_std)


if __name__ == "__main__":
    key = jax.random.PRNGKey(0)
    k_params, k_state = jax.random.split(key)

    params = init_params(k_params)
    packed = pack_params(params)

    B = 8
    state = jax.random.normal(k_state, (B, STATE_SIZE), dtype=jnp.float32)

    mean, std = sac_actor_forward(state, packed)
    jax.block_until_ready((mean, std))

    ref_mean, ref_std = sac_actor_reference(state, params)
    assert mean.shape == (B, ACTION_SIZE) and std.shape == (B, ACTION_SIZE)
    assert jnp.allclose(mean, ref_mean, atol=5e-3, rtol=5e-3), \
        float(jnp.max(jnp.abs(mean - ref_mean)))
    assert jnp.allclose(std, ref_std, atol=5e-3, rtol=5e-3), \
        float(jnp.max(jnp.abs(std - ref_std)))
    assert bool(jnp.all(std > 0.0))

    print("KERNEL_OK")
</pallas_src>

<mosaic_0001>
module attributes {stable_mosaic.version = 11 : i64} {
  func.func @sac_actor_kernel(%arg0: i32, %arg1: memref<16x67xbf16, #tpu.memory_space<vmem>>, %arg2: memref<67x512xbf16, #tpu.memory_space<vmem>>, %arg3: memref<1x512xf32, #tpu.memory_space<vmem>>, %arg4: memref<512x512xbf16, #tpu.memory_space<vmem>>, %arg5: memref<1x512xf32, #tpu.memory_space<vmem>>, %arg6: memref<512x512xbf16, #tpu.memory_space<vmem>>, %arg7: memref<1x512xf32, #tpu.memory_space<vmem>>, %arg8: memref<512x128xbf16, #tpu.memory_space<vmem>>, %arg9: memref<1x128xf32, #tpu.memory_space<vmem>>, %arg10: memref<16x128xf32, #tpu.memory_space<vmem>>) attributes {dimension_semantics = [#tpu.dimension_semantics<parallel>], iteration_bounds = array<i64: 1>, scalar_prefetch = 0 : i64, scratch_operands = 0 : i64, tpu.core_type = #tpu.core_type<tc>, window_params = [{transform_indices = @transform_0, window_bounds = array<i64: 16, 67>}, {pipeline_mode = #tpu.pipeline_mode<synchronous>, transform_indices = @transform_1, window_bounds = array<i64: 67, 512>}, {pipeline_mode = #tpu.pipeline_mode<synchronous>, transform_indices = @transform_2, window_bounds = array<i64: 1, 512>}, {pipeline_mode = #tpu.pipeline_mode<synchronous>, transform_indices = @transform_3, window_bounds = array<i64: 512, 512>}, {pipeline_mode = #tpu.pipeline_mode<synchronous>, transform_indices = @transform_4, window_bounds = array<i64: 1, 512>}, {pipeline_mode = #tpu.pipeline_mode<synchronous>, transform_indices = @transform_5, window_bounds = array<i64: 512, 512>}, {pipeline_mode = #tpu.pipeline_mode<synchronous>, transform_indices = @transform_6, window_bounds = array<i64: 1, 512>}, {pipeline_mode = #tpu.pipeline_mode<synchronous>, transform_indices = @transform_7, window_bounds = array<i64: 512, 128>}, {pipeline_mode = #tpu.pipeline_mode<synchronous>, transform_indices = @transform_8, window_bounds = array<i64: 1, 128>}, {transform_indices = @transform_9, window_bounds = array<i64: 16, 128>}]} {
    %c0 = arith.constant 0 : index
    %c0_0 = arith.constant 0 : index
    %0 = vector.load %arg1[%c0, %c0_0] : memref<16x67xbf16, #tpu.memory_space<vmem>>, vector<16x67xbf16>
    %c0_1 = arith.constant 0 : index
    %c0_2 = arith.constant 0 : index
    %1 = vector.load %arg2[%c0_1, %c0_2] : memref<67x512xbf16, #tpu.memory_space<vmem>>, vector<67x512xbf16>
    %cst = arith.constant dense<0.000000e+00> : vector<16x512xf32>
    %2 = tpu.matmul %0, %1, %cst {dimension_numbers = #tpu.dot_dimension_numbers<[1], [0], [0], [1], [0, 0, 1, 1], [], []>} : vector<16x67xbf16>, vector<67x512xbf16>, vector<16x512xf32> -> vector<16x512xf32>
    %c0_3 = arith.constant 0 : index
    %c0_4 = arith.constant 0 : index
    %3 = vector.load %arg3[%c0_3, %c0_4] : memref<1x512xf32, #tpu.memory_space<vmem>>, vector<1x512xf32>
    %4 = vector.broadcast %3 : vector<1x512xf32> to vector<16x512xf32>
    %5 = arith.addf %2, %4 : vector<16x512xf32>
    %cst_5 = arith.constant 0.000000e+00 : f32
    %6 = vector.broadcast %cst_5 : f32 to vector<16x512xf32>
    %7 = arith.maximumf %5, %6 : vector<16x512xf32>
    %8 = arith.truncf %7 : vector<16x512xf32> to vector<16x512xbf16>
    %c0_6 = arith.constant 0 : index
    %c0_7 = arith.constant 0 : index
    %9 = vector.load %arg4[%c0_6, %c0_7] : memref<512x512xbf16, #tpu.memory_space<vmem>>, vector<512x512xbf16>
    %cst_8 = arith.constant dense<0.000000e+00> : vector<16x512xf32>
    %10 = tpu.matmul %8, %9, %cst_8 {dimension_numbers = #tpu.dot_dimension_numbers<[1], [0], [0], [1], [0, 0, 1, 1], [], []>} : vector<16x512xbf16>, vector<512x512xbf16>, vector<16x512xf32> -> vector<16x512xf32>
    %c0_9 = arith.constant 0 : index
    %c0_10 = arith.constant 0 : index
    %11 = vector.load %arg5[%c0_9, %c0_10] : memref<1x512xf32, #tpu.memory_space<vmem>>, vector<1x512xf32>
    %12 = vector.broadcast %11 : vector<1x512xf32> to vector<16x512xf32>
    %13 = arith.addf %10, %12 : vector<16x512xf32>
    %cst_11 = arith.constant 0.000000e+00 : f32
    %14 = vector.broadcast %cst_11 : f32 to vector<16x512xf32>
    %15 = arith.maximumf %13, %14 : vector<16x512xf32>
    %16 = arith.truncf %15 : vector<16x512xf32> to vector<16x512xbf16>
    %c0_12 = arith.constant 0 : index
    %c0_13 = arith.constant 0 : index
    %17 = vector.load %arg6[%c0_12, %c0_13] : memref<512x512xbf16, #tpu.memory_space<vmem>>, vector<512x512xbf16>
    %cst_14 = arith.constant dense<0.000000e+00> : vector<16x512xf32>
    %18 = tpu.matmul %16, %17, %cst_14 {dimension_numbers = #tpu.dot_dimension_numbers<[1], [0], [0], [1], [0, 0, 1, 1], [], []>} : vector<16x512xbf16>, vector<512x512xbf16>, vector<16x512xf32> -> vector<16x512xf32>
    %c0_15 = arith.constant 0 : index
    %c0_16 = arith.constant 0 : index
    %19 = vector.load %arg7[%c0_15, %c0_16] : memref<1x512xf32, #tpu.memory_space<vmem>>, vector<1x512xf32>
    %20 = vector.broadcast %19 : vector<1x512xf32> to vector<16x512xf32>
    %21 = arith.addf %18, %20 : vector<16x512xf32>
    %cst_17 = arith.constant 0.000000e+00 : f32
    %22 = vector.broadcast %cst_17 : f32 to vector<16x512xf32>
    %23 = arith.maximumf %21, %22 : vector<16x512xf32>
    %24 = arith.truncf %23 : vector<16x512xf32> to vector<16x512xbf16>
    %c0_18 = arith.constant 0 : index
    %c0_19 = arith.constant 0 : index
    %25 = vector.load %arg8[%c0_18, %c0_19] : memref<512x128xbf16, #tpu.memory_space<vmem>>, vector<512x128xbf16>
    %cst_20 = arith.constant dense<0.000000e+00> : vector<16x128xf32>
    %26 = tpu.matmul %24, %25, %cst_20 {dimension_numbers = #tpu.dot_dimension_numbers<[1], [0], [0], [1], [0, 0, 1, 1], [], []>} : vector<16x512xbf16>, vector<512x128xbf16>, vector<16x128xf32> -> vector<16x128xf32>
    %c0_21 = arith.constant 0 : index
    %c0_22 = arith.constant 0 : index
    %27 = vector.load %arg9[%c0_21, %c0_22] : memref<1x128xf32, #tpu.memory_space<vmem>>, vector<1x128xf32>
    %28 = vector.broadcast %27 : vector<1x128xf32> to vector<16x128xf32>
    %29 = arith.addf %26, %28 : vector<16x128xf32>
    %30 = tpu.iota {dimensions = array<i32: 1>} : vector<16x128xi32>
    %c21_i32 = arith.constant 21 : i32
    %31 = vector.broadcast %c21_i32 : i32 to vector<16x128xi32>
    %32 = arith.cmpi sge, %30, %31 : vector<16x128xi32>
    %c42_i32 = arith.constant 42 : i32
    %33 = vector.broadcast %c42_i32 : i32 to vector<16x128xi32>
    %34 = arith.cmpi slt, %30, %33 : vector<16x128xi32>
    %35 = arith.andi %32, %34 : vector<16x128xi1>
    %cst_23 = arith.constant -2.000000e+01 : f32
    %cst_24 = arith.constant 2.000000e+00 : f32
    %36 = vector.broadcast %cst_23 : f32 to vector<16x128xf32>
    %37 = arith.maximumf %36, %29 : vector<16x128xf32>
    %38 = vector.broadcast %cst_24 : f32 to vector<16x128xf32>
    %39 = arith.minimumf %38, %37 : vector<16x128xf32>
    %40 = math.exp %39 : vector<16x128xf32>
    %41 = arith.select %35, %40, %29 : vector<16x128xi1>, vector<16x128xf32>
    %c0_25 = arith.constant 0 : index
    %c0_26 = arith.constant 0 : index
    %42 = vector.load %arg10[%c0_25, %c0_26] : memref<16x128xf32, #tpu.memory_space<vmem>>, vector<16x128xf32>
    tpu.vector_store %arg10[%c0_25, %c0_26], %41 {strides = array<i32>} : memref<16x128xf32, #tpu.memory_space<vmem>>, vector<16x128xf32>,
    return
  }
  func.func @transform_0(%arg0: i32) -> (i32, i32) {
    %c0_i32 = arith.constant 0 : i32
    %c0_i32_0 = arith.constant 0 : i32
    return %arg0, %c0_i32 : i32, i32
  }
  func.func @transform_1(%arg0: i32) -> (i32, i32) {
    %c0_i32 = arith.constant 0 : i32
    %c0_i32_0 = arith.constant 0 : i32
    %c0_i32_1 = arith.constant 0 : i32
    return %c0_i32, %c0_i32_0 : i32, i32
  }
  func.func @transform_2(%arg0: i32) -> (i32, i32) {
    %c0_i32 = arith.constant 0 : i32
    %c0_i32_0 = arith.constant 0 : i32
    %c0_i32_1 = arith.constant 0 : i32
    return %c0_i32, %c0_i32_0 : i32, i32
  }
  func.func @transform_3(%arg0: i32) -> (i32, i32) {
    %c0_i32 = arith.constant 0 : i32
    %c0_i32_0 = arith.constant 0 : i32
    %c0_i32_1 = arith.constant 0 : i32
    return %c0_i32, %c0_i32_0 : i32, i32
  }
  func.func @transform_4(%arg0: i32) -> (i32, i32) {
    %c0_i32 = arith.constant 0 : i32
    %c0_i32_0 = arith.constant 0 : i32
    %c0_i32_1 = arith.constant 0 : i32
    return %c0_i32, %c0_i32_0 : i32, i32
  }
  func.func @transform_5(%arg0: i32) -> (i32, i32) {
    %c0_i32 = arith.constant 0 : i32
    %c0_i32_0 = arith.constant 0 : i32
    %c0_i32_1 = arith.constant 0 : i32
    return %c0_i32, %c0_i32_0 : i32, i32
  }
  func.func @transform_6(%arg0: i32) -> (i32, i32) {
    %c0_i32 = arith.constant 0 : i32
    %c0_i32_0 = arith.constant 0 : i32
    %c0_i32_1 = arith.constant 0 : i32
    return %c0_i32, %c0_i32_0 : i32, i32
  }
  func.func @transform_7(%arg0: i32) -> (i32, i32) {
    %c0_i32 = arith.constant 0 : i32
    %c0_i32_0 = arith.constant 0 : i32
    %c0_i32_1 = arith.constant 0 : i32
    return %c0_i32, %c0_i32_0 : i32, i32
  }
  func.func @transform_8(%arg0: i32) -> (i32, i32) {
    %c0_i32 = arith.constant 0 : i32
    %c0_i32_0 = arith.constant 0 : i32
    %c0_i32_1 = arith.constant 0 : i32
    return %c0_i32, %c0_i32_0 : i32, i32
  }
  func.func @transform_9(%arg0: i32) -> (i32, i32) {
    %c0_i32 = arith.constant 0 : i32
    %c0_i32_0 = arith.constant 0 : i32
    return %arg0, %c0_i32 : i32, i32
  }
}

</mosaic_0001>

<llo_original>
// kernel: tpu_custom_call.1
$region0: #{tpu_custom_call.1}
  #allocation0 [shape = 'u32[]', space=smem, size = 0x4, offset = 0x4, fixed_abs, tag = 'smem constant byte address 0x4 - core index']
  #allocation1 [shape = 'u32[144,128]{1,0:T(1,128)}', space=vmem, size = 0x12000, scoped, tag = 'internal scratch']
  %s0 = inlined_call_operand.hbm [shape: bf16[16,67], index: 0, kind: input, shape index: {}]
  %s1 = inlined_call_operand.hbm [shape: bf16[67,512], index: 1, kind: input, shape index: {}]
  %s2 = inlined_call_operand.hbm [shape: f32[1,512], index: 2, kind: input, shape index: {}]
  %s3 = inlined_call_operand.hbm [shape: bf16[512,512], index: 3, kind: input, shape index: {}]
  %s4 = inlined_call_operand.vmem [shape: f32[1,512], index: 4, kind: input, shape index: {}]
  %s5 = inlined_call_operand.hbm [shape: bf16[512,512], index: 5, kind: input, shape index: {}]
  %s6 = inlined_call_operand.vmem [shape: f32[1,512], index: 6, kind: input, shape index: {}]
  %s7 = inlined_call_operand.hbm [shape: bf16[512,128], index: 7, kind: input, shape index: {}]
  %s8 = inlined_call_operand.vmem [shape: f32[1,128], index: 8, kind: input, shape index: {}]
  %s9 = inlined_call_operand.hbm [shape: f32[16,128], index: 9, kind: output, shape index: {}]
  %s10 = sld [smem:[#allocation0]]
  $region70: #{tpu_custom_call.1} parent=0
    _
  %s12 = ssub.s32 1, %s10
  %s13 = scalar_select 0, %s12, %s10
  $region1: #{tpu_custom_call.1} parent=0
    #allocation2 [shape = 'u8[4096]{0}', space=vmem, size = 0x1000, scoped, tag = 'input window, operand 0, single buffered']
    #allocation3 [shape = 's32[1]{0}', space=sflag, size = 0x4, scoped, tag = 'scoped memory for tpu_custom_call.1']
    #allocation4 [shape = 's32[1]{0}', space=sflag, size = 0x4, scoped, tag = 'scoped memory for tpu_custom_call.1']
    #allocation5 [shape = 'u8[73728]{0}', space=vmem, size = 0x12000, scoped, tag = 'input window, operand 1, single buffered']
    #allocation6 [shape = 's32[1]{0}', space=sflag, size = 0x4, scoped, tag = 'scoped memory for tpu_custom_call.1']
    #allocation7 [shape = 'u8[2048]{0}', space=vmem, size = 0x800, scoped, tag = 'input window, operand 2, single buffered']
    #allocation8 [shape = 'u8[524288]{0}', space=vmem, size = 0x80000, scoped, tag = 'input window, operand 3, single buffered']
    #allocation9 [shape = 's32[1]{0}', space=sflag, size = 0x4, scoped, tag = 'scoped memory for tpu_custom_call.1']
    #allocation10 [shape = 'u8[524288]{0}', space=vmem, size = 0x80000, scoped, tag = 'input window, operand 5, single buffered']
    #allocation11 [shape = 'u8[131072]{0}', space=vmem, size = 0x20000, scoped, tag = 'input window, operand 7, single buffered']
    #allocation12 [shape = 's32[1]{0}', space=sflag, size = 0x4, scoped, tag = 'scoped memory for tpu_custom_call.1']
    #allocation13 [shape = 'u8[8192]{0}', space=vmem, size = 0x2000, scoped, tag = 'output window, operand 0, single buffered']
    %14 = vsyncpa [#allocation3], 0
    %15 = vsyncpa [#allocation6], 0
    %16 = vsyncpa [#allocation9], 0
    %17 = vsyncpa [#allocation12], 0
    %18 = vsyncpa [#allocation4], 0
    // Predicated region
    $region2: #{tpu_custom_call.1} parent=1 // pred_check
      _
    $region3: #{tpu_custom_call.1} parent=1 // pred_check_branch
      %20 = sbr.rel (0) target = $region5
    $region4: #{tpu_custom_call.1} parent=1 // pred_region
      %s22 = ssub.s32 128, 128
      %23 = vsyncadd [#allocation3], %s22
      %s24 = sshll.u32 [#allocation2], 4
      %s25 = int_to_ptr.vmem [resolvable:$true] %s24
      %30 = dma.hbm_to_vmem [thread:$0]  %s0, 128, %s25, [#allocation3], 64, 64, 4
    $region5: #{tpu_custom_call.1} parent=1 // pred_fallthru
      _
    // Predicated region
    $region6: #{tpu_custom_call.1} parent=1 // pred_check
      _
    $region7: #{tpu_custom_call.1} parent=1 // pred_check_branch
      %32 = sbr.rel (0) target = $region9
    $region8: #{tpu_custom_call.1} parent=1 // pred_region
      %s34 = ssub.s32 2304, 2304
      %35 = vsyncadd [#allocation6], %s34
      %s36 = sshll.u32 [#allocation5], 4
      %s37 = int_to_ptr.vmem [resolvable:$true] %s36
      %42 = dma.hbm_to_vmem [thread:$0]  %s1, 2304, %s37, [#allocation6], 256, 256, 16
    $region9: #{tpu_custom_call.1} parent=1 // pred_fallthru
      _
    // Predicated region
    $region10: #{tpu_custom_call.1} parent=1 // pred_check
      _
    $region11: #{tpu_custom_call.1} parent=1 // pred_check_branch
      %44 = sbr.rel (0) target = $region13
    $region12: #{tpu_custom_call.1} parent=1 // pred_region
      %s46 = ssub.s32 64, 64
      %47 = vsyncadd [#allocation6], %s46
      %s49 = sshll.u32 [#allocation7], 4
      %s50 = int_to_ptr.vmem [resolvable:$true] %s49
      %52 = dma.hbm_to_vmem [thread:$0]  %s2, 64, %s50, [#allocation6]
    $region13: #{tpu_custom_call.1} parent=1 // pred_fallthru
      _
    // Predicated region
    $region14: #{tpu_custom_call.1} parent=1 // pred_check
      _
    $region15: #{tpu_custom_call.1} parent=1 // pred_check_branch
      %54 = sbr.rel (0) target = $region17
    $region16: #{tpu_custom_call.1} parent=1 // pred_region
      %s56 = ssub.s32 16384, 16384
      %57 = vsyncadd [#allocation9], %s56
      %s58 = sshll.u32 [#allocation8], 4
      %s59 = int_to_ptr.vmem [resolvable:$true] %s58
      %64 = dma.hbm_to_vmem [thread:$0]  %s3, 16384, %s59, [#allocation9], 256, 256, 16
    $region17: #{tpu_custom_call.1} parent=1 // pred_fallthru
      _
    // Predicated region
    $region18: #{tpu_custom_call.1} parent=1 // pred_check
      _
    $region19: #{tpu_custom_call.1} parent=1 // pred_check_branch
      %66 = sbr.rel (0) target = $region21
    $region20: #{tpu_custom_call.1} parent=1 // pred_region
      _
    $region21: #{tpu_custom_call.1} parent=1 // pred_fallthru
      _
    // Predicated region
    $region22: #{tpu_custom_call.1} parent=1 // pred_check
      _
    $region23: #{tpu_custom_call.1} parent=1 // pred_check_branch
      %68 = sbr.rel (0) target = $region25
    $region24: #{tpu_custom_call.1} parent=1 // pred_region
      %s70 = ssub.s32 16384, 16384
      %71 = vsyncadd [#allocation9], %s70
      %s72 = sshll.u32 [#allocation10], 4
      %s73 = int_to_ptr.vmem [resolvable:$true] %s72
      %78 = dma.hbm_to_vmem [thread:$0]  %s5, 16384, %s73, [#allocation9], 256, 256, 16
    $region25: #{tpu_custom_call.1} parent=1 // pred_fallthru
      _
    // Predicated region
    $region26: #{tpu_custom_call.1} parent=1 // pred_check
      _
    $region27: #{tpu_custom_call.1} parent=1 // pred_check_branch
      %80 = sbr.rel (0) target = $region29
    $region28: #{tpu_custom_call.1} parent=1 // pred_region
      _
    $region29: #{tpu_custom_call.1} parent=1 // pred_fallthru
      _
    // Predicated region
    $region30: #{tpu_custom_call.1} parent=1 // pred_check
      _
    $region31: #{tpu_custom_call.1} parent=1 // pred_check_branch
      %82 = sbr.rel (0) target = $region33
    $region32: #{tpu_custom_call.1} parent=1 // pred_region
      %s84 = ssub.s32 4096, 4096
      %85 = vsyncadd [#allocation12], %s84
      %s86 = sshll.u32 [#allocation11], 4
      %s87 = int_to_ptr.vmem [resolvable:$true] %s86
      %92 = dma.hbm_to_vmem [thread:$0]  %s7, 4096, %s87, [#allocation12], 64, 64, 4
    $region33: #{tpu_custom_call.1} parent=1 // pred_fallthru
      _
    // Predicated region
    $region34: #{tpu_custom_call.1} parent=1 // pred_check
      _
    $region35: #{tpu_custom_call.1} parent=1 // pred_check_branch
      %94 = sbr.rel (0) target = $region37
    $region36: #{tpu_custom_call.1} parent=1 // pred_region
      _
    $region37: #{tpu_custom_call.1} parent=1 // pred_fallthru
      _
    // Predicated region
    $region38: #{tpu_custom_call.1} parent=1 // pred_check
      _
    $region39: #{tpu_custom_call.1} parent=1 // pred_check_branch
      %96 = sbr.rel (0) target = $region41
    $region40: #{tpu_custom_call.1} parent=1 // pred_region
      %97 = dma.done [#allocation3], 128
    $region41: #{tpu_custom_call.1} parent=1 // pred_fallthru
      _
    // Predicated region
    $region42: #{tpu_custom_call.1} parent=1 // pred_check
      _
    $region43: #{tpu_custom_call.1} parent=1 // pred_check_branch
      %99 = sbr.rel (0) target = $region45
    $region44: #{tpu_custom_call.1} parent=1 // pred_region
      %100 = dma.done [#allocation6], 2304
    $region45: #{tpu_custom_call.1} parent=1 // pred_fallthru
      _
    // Predicated region
    $region46: #{tpu_custom_call.1} parent=1 // pred_check
      _
    $region47: #{tpu_custom_call.1} parent=1 // pred_check_branch
      %102 = sbr.rel (0) target = $region49
    $region48: #{tpu_custom_call.1} parent=1 // pred_region
      %103 = dma.done [#allocation6], 64
    $region49: #{tpu_custom_call.1} parent=1 // pred_fallthru
      _
    // Predicated region
    $region50: #{tpu_custom_call.1} parent=1 // pred_check
      _
    $region51: #{tpu_custom_call.1} parent=1 // pred_check_branch
      %105 = sbr.rel (0) target = $region53
    $region52: #{tpu_custom_call.1} parent=1 // pred_region
      %106 = dma.done [#allocation9], 16384
    $region53: #{tpu_custom_call.1} parent=1 // pred_fallthru
      _
    // Predicated region
    $region54: #{tpu_custom_call.1} parent=1 // pred_check
      _
    $region55: #{tpu_custom_call.1} parent=1 // pred_check_branch
      %108 = sbr.rel (0) target = $region57
    $region56: #{tpu_custom_call.1} parent=1 // pred_region
      %109 = dma.done [#allocation9], 16384
    $region57: #{tpu_custom_call.1} parent=1 // pred_fallthru
      _
    // Predicated region
    $region58: #{tpu_custom_call.1} parent=1 // pred_check
      _
    $region59: #{tpu_custom_call.1} parent=1 // pred_check_branch
      %111 = sbr.rel (0) target = $region61
    $region60: #{tpu_custom_call.1} parent=1 // pred_region
      %112 = dma.done [#allocation12], 4096
    $region61: #{tpu_custom_call.1} parent=1 // pred_fallthru
      _
    %v114 = vld [vmem:[#allocation2] sm:$0xf]
    %v115 = vld [vmem:[#allocation2 + $0x4] sm:$0xf]
    %v116 = vld [vmem:[#allocation5] sm:$0xff]
    %v117 = vld [vmem:[#allocation5 + $0x8] sm:$0xff]
    %v118 = vld [vmem:[#allocation5 + $0x10] sm:$0xff]
    %v119 = vld [vmem:[#allocation5 + $0x18] sm:$0xff]
    %v120 = vld [vmem:[#allocation5 + $0x20] sm:$0xff]
    %v121 = vld [vmem:[#allocation5 + $0x28] sm:$0xff]
    %v122 = vld [vmem:[#allocation5 + $0x30] sm:$0xff]
    %v123 = vld [vmem:[#allocation5 + $0x38] sm:$0xff]
    %v124 = vld [vmem:[#allocation5 + $0x40] sm:$0xff]
    %v125 = vld [vmem:[#allocation5 + $0x48] sm:$0xff]
    %v126 = vld [vmem:[#allocation5 + $0x50] sm:$0xff]
    %v127 = vld [vmem:[#allocation5 + $0x58] sm:$0xff]
    %v128 = vld [vmem:[#allocation5 + $0x60] sm:$0xff]
    %v129 = vld [vmem:[#allocation5 + $0x68] sm:$0xff]
    %v130 = vld [vmem:[#allocation5 + $0x70] sm:$0xff]
    %v131 = vld [vmem:[#allocation5 + $0x78] sm:$0xff]
    %v132 = vld [vmem:[#allocation5 + $0x80] sm:$0x33]
    %v133 = vld [vmem:[#allocation5 + $0x88] sm:$0x33]
    %v134 = vld [vmem:[#allocation7] sm:$0xf]
    %v136 = vlaneseq
    %v137 = vshrl.u32 %v136, 7
    %v138 = vsub.s32 0, %v137
    %v139 = vrot.slane %v134, %v138
    %v140 = vlaneseq
    %v141 = vshrl.u32 %v140, 7
    %v142 = vsub.s32 1, %v141
    %v143 = vrot.slane %v134, %v142
    %v144 = vlaneseq
    %v145 = vshrl.u32 %v144, 7
    %v146 = vsub.s32 2, %v145
    %v147 = vrot.slane %v134, %v146
    %v148 = vlaneseq
    %v149 = vshrl.u32 %v148, 7
    %v150 = vsub.s32 3, %v149
    %v151 = vrot.slane %v134, %v150
    %v158 = vunpack.c.l.b16 %v114
    %v159 = vunpack.c.l.b16 %v115
    %v160 = vpack.c.b16 %v159, %v158
    %v179 = vunpack.c.l.b16 %v116
    %v180 = vunpack.c.h.b16 %v116
    %v181 = vunpack.c.l.b16 %v117
    %v182 = vunpack.c.h.b16 %v117
    %v183 = vunpack.c.l.b16 %v118
    %v184 = vunpack.c.h.b16 %v118
    %v185 = vunpack.c.l.b16 %v119
    %v186 = vunpack.c.h.b16 %v119
    %v187 = vunpack.c.l.b16 %v120
    %v188 = vunpack.c.h.b16 %v120
    %v189 = vunpack.c.l.b16 %v121
    %v190 = vunpack.c.h.b16 %v121
    %v191 = vunpack.c.l.b16 %v122
    %v192 = vunpack.c.h.b16 %v122
    %v193 = vunpack.c.l.b16 %v123
    %v194 = vunpack.c.h.b16 %v123
    %v195 = vunpack.c.l.b16 %v124
    %v196 = vunpack.c.h.b16 %v124
    %v197 = vunpack.c.l.b16 %v125
    %v198 = vunpack.c.h.b16 %v125
    %v199 = vunpack.c.l.b16 %v126
    %v200 = vunpack.c.h.b16 %v126
    %v201 = vunpack.c.l.b16 %v127
    %v202 = vunpack.c.h.b16 %v127
    %v203 = vunpack.c.l.b16 %v128
    %v204 = vunpack.c.h.b16 %v128
    %v205 = vunpack.c.l.b16 %v129
    %v206 = vunpack.c.h.b16 %v129
    %v207 = vunpack.c.l.b16 %v130
    %v208 = vunpack.c.h.b16 %v130
    %v209 = vunpack.c.l.b16 %v131
    %v210 = vunpack.c.h.b16 %v131
    %v211 = vunpack.c.l.b16 %v132
    %v212 = vunpack.c.h.b16 %v132
    %v213 = vunpack.c.l.b16 %v133
    %v214 = vunpack.c.h.b16 %v133
    %v215 = vpack.c.b16 %v183, %v179
    %v216 = vpack.c.b16 %v184, %v180
    %v217 = vpack.c.b16 %v185, %v181
    %v218 = vpack.c.b16 %v186, %v182
    %v219 = vpack.c.b16 %v191, %v187
    %v220 = vpack.c.b16 %v192, %v188
    %v221 = vpack.c.b16 %v193, %v189
    %v222 = vpack.c.b16 %v194, %v190
    %v223 = vpack.c.b16 %v199, %v195
    %v224 = vpack.c.b16 %v200, %v196
    %v225 = vpack.c.b16 %v201, %v197
    %v226 = vpack.c.b16 %v202, %v198
    %v227 = vpack.c.b16 %v207, %v203
    %v228 = vpack.c.b16 %v208, %v204
    %v229 = vpack.c.b16 %v209, %v205
    %v230 = vpack.c.b16 %v210, %v206
    %v231 = vpack.c.b16 %v211, %v211
    %v232 = vpack.c.b16 %v212, %v212
    %v233 = vpack.c.b16 %v213, %v213
    %v234 = vpack.c.b16 %v214, %v214
    %vm251 = vcmask 547840
    %v253 = vsel %vm251, %v160, 0
    %vm255 = vcmask 1040384
    %vm256 = vcmask 1041408
    %v257 = vsel %vm255, 4294967295, 65535
    %v258 = vsel %vm256, %v257, 0
    %v260 = vand.u32 %v231, %v258
    %v263 = vand.u32 %v232, %v258
    %v266 = vand.u32 %v233, %v258
    %v269 = vand.u32 %v234, %v258
    %271 = vmatprep.subr.bf16.mxu0 0
    %272 = vmatpush1.bf16.msra.mxu0 0
    %273 = vmatprep.subr.bf16.mxu0 0
    %274 = vmatpush1.bf16.msra.mxu0 0
    %275 = vmatprep.subr.bf16.mxu0 0
    %276 = vmatpush1.bf16.msra.mxu0 0
    %277 = vmatprep.subr.bf16.mxu0 %v263
    %278 = vmatpush1.bf16.msra.mxu0 %v260
    %279 = vmatprep.subr.bf16.mxu0 %v228
    %280 = vmatpush1.bf16.msra.mxu0 %v227
    %281 = vmatprep.subr.bf16.mxu0 %v224
    %282 = vmatpush1.bf16.msra.mxu0 %v223
    %283 = vmatprep.subr.bf16.mxu0 %v220
    %284 = vmatpush1.bf16.msra.mxu0 %v219
    %285 = vmatprep.subr.bf16.mxu0 %v216
    %286 = vmatpush1.bf16.msra.mxu0 %v215
    %287 = vmatprep.subr.bf16.mxu0 0
    %288 = vmatpush2.bf16.msra.mxu0 0
    %289 = vmatprep.subr.bf16.mxu0 0
    %290 = vmatpush2.bf16.msra.mxu0 0
    %291 = vmatprep.subr.bf16.mxu0 0
    %292 = vmatpush2.bf16.msra.mxu0 0
    %293 = vmatprep.subr.bf16.mxu0 0
    %294 = vmatpush2.bf16.msra.mxu0 0
    %295 = vmatprep.subr.bf16.mxu0 0
    %296 = vmatpush2.bf16.msra.mxu0 0
    %297 = vmatprep.subr.bf16.mxu0 0
    %298 = vmatpush2.bf16.msra.mxu0 0
    %299 = vmatprep.subr.bf16.mxu0 0
    %300 = vmatpush2.bf16.msra.mxu0 0
    %301 = vmatprep.subr.bf16.mxu0 0
    %302 = vmatpush2.bf16.msra.mxu0 0
    %303 = vmatprep.mubr.bf16.mxu0 0
    %304 = vmatmul.mubr.bf16.gmra.mxu0 %v253
    %v305 = vpop.f32.mrf.mxu0
    %v306 = vadd.f32 %v139, %v305
    %v307 = vpop.f32.mrf.mxu0
    %v308 = vadd.f32 %v143, %v307
    %v309 = vpop.f32.mrf.mxu0
    %v310 = vadd.f32 %v139, %v309
    %v311 = vpop.f32.mrf.mxu0
    %v312 = vadd.f32 %v143, %v311
    %313 = vdwg.mxu0
    %314 = vmatprep.subr.bf16.mxu0 0
    %315 = vmatpush1.bf16.msra.mxu0 0
    %316 = vmatprep.subr.bf16.mxu0 0
    %317 = vmatpush1.bf16.msra.mxu0 0
    %318 = vmatprep.subr.bf16.mxu0 0
    %319 = vmatpush1.bf16.msra.mxu0 0
    %320 = vmatprep.subr.bf16.mxu0 %v269
    %321 = vmatpush1.bf16.msra.mxu0 %v266
    %322 = vmatprep.subr.bf16.mxu0 %v230
    %323 = vmatpush1.bf16.msra.mxu0 %v229
    %324 = vmatprep.subr.bf16.mxu0 %v226
    %325 = vmatpush1.bf16.msra.mxu0 %v225
    %326 = vmatprep.subr.bf16.mxu0 %v222
    %327 = vmatpush1.bf16.msra.mxu0 %v221
    %328 = vmatprep.subr.bf16.mxu0 %v218
    %329 = vmatpush1.bf16.msra.mxu0 %v217
    %330 = vmatprep.subr.bf16.mxu0 0
    %331 = vmatpush2.bf16.msra.mxu0 0
    %332 = vmatprep.subr.bf16.mxu0 0
    %333 = vmatpush2.bf16.msra.mxu0 0
    %334 = vmatprep.subr.bf16.mxu0 0
    %335 = vmatpush2.bf16.msra.mxu0 0
    %336 = vmatprep.subr.bf16.mxu0 0
    %337 = vmatpush2.bf16.msra.mxu0 0
    %338 = vmatprep.subr.bf16.mxu0 0
    %339 = vmatpush2.bf16.msra.mxu0 0
    %340 = vmatprep.subr.bf16.mxu0 0
    %341 = vmatpush2.bf16.msra.mxu0 0
    %342 = vmatprep.subr.bf16.mxu0 0
    %343 = vmatpush2.bf16.msra.mxu0 0
    %344 = vmatprep.subr.bf16.mxu0 0
    %345 = vmatpush2.bf16.msra.mxu0 0
    %346 = vmatprep.mubr.bf16.mxu0 0
    %347 = vmatmul.mubr.bf16.gmra.mxu0 %v253
    %v348 = vpop.f32.mrf.mxu0
    %v349 = vadd.f32 %v147, %v348
    %v350 = vpop.f32.mrf.mxu0
    %v351 = vadd.f32 %v151, %v350
    %v352 = vpop.f32.mrf.mxu0
    %v353 = vadd.f32 %v147, %v352
    %v354 = vpop.f32.mrf.mxu0
    %v355 = vadd.f32 %v151, %v354
    %356 = vdwg.mxu0
    %v357 = vmax.f32 %v306, 0.0
    %v358 = vmax.f32 %v308, 0.0
    %v359 = vmax.f32 %v349, 0.0
    %v360 = vmax.f32 %v351, 0.0
    %v361 = vmax.f32 %v310, 0.0
    %v362 = vmax.f32 %v312, 0.0
    %v363 = vmax.f32 %v353, 0.0
    %v364 = vmax.f32 %v355, 0.0
    %v365 = vpack.c.bf16 %v361, %v357
    %v366 = vpack.c.bf16 %v362, %v358
    %v367 = vpack.c.bf16 %v363, %v359
    %v368 = vpack.c.bf16 %v364, %v360
    %v369 = vld [vmem:[#allocation8] sm:$0xff]
    %v370 = vld [vmem:[#allocation8 + $0x8] sm:$0xff]
    %v371 = vld [vmem:[#allocation8 + $0x10] sm:$0xff]
    %v372 = vld [vmem:[#allocation8 + $0x18] sm:$0xff]
    %v373 = vld [vmem:[#allocation8 + $0x20] sm:$0xff]
    %v374 = vld [vmem:[#allocation8 + $0x28] sm:$0xff]
    %v375 = vld [vmem:[#allocation8 + $0x30] sm:$0xff]
    %v376 = vld [vmem:[#allocation8 + $0x38] sm:$0xff]
    %v377 = vld [vmem:[#allocation8 + $0x40] sm:$0xff]
    %v378 = vld [vmem:[#allocation8 + $0x48] sm:$0xff]
    %v379 = vld [vmem:[#allocation8 + $0x50] sm:$0xff]
    %v380 = vld [vmem:[#allocation8 + $0x58] sm:$0xff]
    %v381 = vld [vmem:[#allocation8 + $0x60] sm:$0xff]
    %v382 = vld [vmem:[#allocation8 + $0x68] sm:$0xff]
    %v383 = vld [vmem:[#allocation8 + $0x70] sm:$0xff]
    %v384 = vld [vmem:[#allocation8 + $0x78] sm:$0xff]
    %v385 = vld [vmem:[#allocation8 + $0x80] sm:$0xff]
    %v386 = vld [vmem:[#allocation8 + $0x88] sm:$0xff]
    %v387 = vld [vmem:[#allocation8 + $0x90] sm:$0xff]
    %v388 = vld [vmem:[#allocation8 + $0x98] sm:$0xff]
    %v389 = vld [vmem:[#allocation8 + $0xa0] sm:$0xff]
    %v390 = vld [vmem:[#allocation8 + $0xa8] sm:$0xff]
    %v391 = vld [vmem:[#allocation8 + $0xb0] sm:$0xff]
    %v392 = vld [vmem:[#allocation8 + $0xb8] sm:$0xff]
    %v393 = vld [vmem:[#allocation8 + $0xc0] sm:$0xff]
    %v394 = vld [vmem:[#allocation8 + $0xc8] sm:$0xff]
    %v395 = vld [vmem:[#allocation8 + $0xd0] sm:$0xff]
    %v396 = vld [vmem:[#allocation8 + $0xd8] sm:$0xff]
    %v397 = vld [vmem:[#allocation8 + $0xe0] sm:$0xff]
    %v398 = vld [vmem:[#allocation8 + $0xe8] sm:$0xff]
    %v399 = vld [vmem:[#allocation8 + $0xf0] sm:$0xff]
    %v400 = vld [vmem:[#allocation8 + $0xf8] sm:$0xff]
    %v401 = vld [vmem:[#allocation8 + $0x100] sm:$0xff]
    %v402 = vld [vmem:[#allocation8 + $0x108] sm:$0xff]
    %v403 = vld [vmem:[#allocation8 + $0x110] sm:$0xff]
    %v404 = vld [vmem:[#allocation8 + $0x118] sm:$0xff]
    %v405 = vld [vmem:[#allocation8 + $0x120] sm:$0xff]
    %v406 = vld [vmem:[#allocation8 + $0x128] sm:$0xff]
    %v407 = vld [vmem:[#allocation8 + $0x130] sm:$0xff]
    %v408 = vld [vmem:[#allocation8 + $0x138] sm:$0xff]
    %v409 = vld [vmem:[#allocation8 + $0x140] sm:$0xff]
    %v410 = vld [vmem:[#allocation8 + $0x148] sm:$0xff]
    %v411 = vld [vmem:[#allocation8 + $0x150] sm:$0xff]
    %v412 = vld [vmem:[#allocation8 + $0x158] sm:$0xff]
    %v413 = vld [vmem:[#allocation8 + $0x160] sm:$0xff]
    %v414 = vld [vmem:[#allocation8 + $0x168] sm:$0xff]
    %v415 = vld [vmem:[#allocation8 + $0x170] sm:$0xff]
    %v416 = vld [vmem:[#allocation8 + $0x178] sm:$0xff]
    %v417 = vld [vmem:[#allocation8 + $0x180] sm:$0xff]
    %v418 = vld [vmem:[#allocation8 + $0x188] sm:$0xff]
    %v419 = vld [vmem:[#allocation8 + $0x190] sm:$0xff]
    %v420 = vld [vmem:[#allocation8 + $0x198] sm:$0xff]
    %v421 = vld [vmem:[#allocation8 + $0x1a0] sm:$0xff]
    %v422 = vld [vmem:[#allocation8 + $0x1a8] sm:$0xff]
    %v423 = vld [vmem:[#allocation8 + $0x1b0] sm:$0xff]
    %v424 = vld [vmem:[#allocation8 + $0x1b8] sm:$0xff]
    %v425 = vld [vmem:[#allocation8 + $0x1c0] sm:$0xff]
    %v426 = vld [vmem:[#allocation8 + $0x1c8] sm:$0xff]
    %v427 = vld [vmem:[#allocation8 + $0x1d0] sm:$0xff]
    %v428 = vld [vmem:[#allocation8 + $0x1d8] sm:$0xff]
    %v429 = vld [vmem:[#allocation8 + $0x1e0] sm:$0xff]
    %v430 = vld [vmem:[#allocation8 + $0x1e8] sm:$0xff]
    %v431 = vld [vmem:[#allocation8 + $0x1f0] sm:$0xff]
    %v432 = vld [vmem:[#allocation8 + $0x1f8] sm:$0xff]
    %v433 = vld [vmem:[#allocation8 + $0x200] sm:$0xff]
    %v434 = vld [vmem:[#allocation8 + $0x208] sm:$0xff]
    %v435 = vld [vmem:[#allocation8 + $0x210] sm:$0xff]
    %v436 = vld [vmem:[#allocation8 + $0x218] sm:$0xff]
    %v437 = vld [vmem:[#allocation8 + $0x220] sm:$0xff]
    %v438 = vld [vmem:[#allocation8 + $0x228] sm:$0xff]
    %v439 = vld [vmem:[#allocation8 + $0x230] sm:$0xff]
    %v440 = vld [vmem:[#allocation8 + $0x238] sm:$0xff]
    %v441 = vld [vmem:[#allocation8 + $0x240] sm:$0xff]
    %v442 = vld [vmem:[#allocation8 + $0x248] sm:$0xff]
    %v443 = vld [vmem:[#allocation8 + $0x250] sm:$0xff]
    %v444 = vld [vmem:[#allocation8 + $0x258] sm:$0xff]
    %v445 = vld [vmem:[#allocation8 + $0x260] sm:$0xff]
    %v446 = vld [vmem:[#allocation8 + $0x268] sm:$0xff]
    %v447 = vld [vmem:[#allocation8 + $0x270] sm:$0xff]
    %v448 = vld [vmem:[#allocation8 + $0x278] sm:$0xff]
    %v449 = vld [vmem:[#allocation8 + $0x280] sm:$0xff]
    %v450 = vld [vmem:[#allocation8 + $0x288] sm:$0xff]
    %v451 = vld [vmem:[#allocation8 + $0x290] sm:$0xff]
    %v452 = vld [vmem:[#allocation8 + $0x298] sm:$0xff]
    %v453 = vld [vmem:[#allocation8 + $0x2a0] sm:$0xff]
    %v454 = vld [vmem:[#allocation8 + $0x2a8] sm:$0xff]
    %v455 = vld [vmem:[#allocation8 + $0x2b0] sm:$0xff]
    %v456 = vld [vmem:[#allocation8 + $0x2b8] sm:$0xff]
    %v457 = vld [vmem:[#allocation8 + $0x2c0] sm:$0xff]
    %v458 = vld [vmem:[#allocation8 + $0x2c8] sm:$0xff]
    %v459 = vld [vmem:[#allocation8 + $0x2d0] sm:$0xff]
    %v460 = vld [vmem:[#allocation8 + $0x2d8] sm:$0xff]
    %v461 = vld [vmem:[#allocation8 + $0x2e0] sm:$0xff]
    %v462 = vld [vmem:[#allocation8 + $0x2e8] sm:$0xff]
    %v463 = vld [vmem:[#allocation8 + $0x2f0] sm:$0xff]
    %v464 = vld [vmem:[#allocation8 + $0x2f8] sm:$0xff]
    %v465 = vld [vmem:[#allocation8 + $0x300] sm:$0xff]
    %v466 = vld [vmem:[#allocation8 + $0x308] sm:$0xff]
    %v467 = vld [vmem:[#allocation8 + $0x310] sm:$0xff]
    %v468 = vld [vmem:[#allocation8 + $0x318] sm:$0xff]
    %v469 = vld [vmem:[#allocation8 + $0x320] sm:$0xff]
    %v470 = vld [vmem:[#allocation8 + $0x328] sm:$0xff]
    %v471 = vld [vmem:[#allocation8 + $0x330] sm:$0xff]
    %v472 = vld [vmem:[#allocation8 + $0x338] sm:$0xff]
    %v473 = vld [vmem:[#allocation8 + $0x340] sm:$0xff]
    %v474 = vld [vmem:[#allocation8 + $0x348] sm:$0xff]
    %v475 = vld [vmem:[#allocation8 + $0x350] sm:$0xff]
    %v476 = vld [vmem:[#allocation8 + $0x358] sm:$0xff]
    %v477 = vld [vmem:[#allocation8 + $0x360] sm:$0xff]
    %v478 = vld [vmem:[#allocation8 + $0x368] sm:$0xff]
    %v479 = vld [vmem:[#allocation8 + $0x370] sm:$0xff]
    %v480 = vld [vmem:[#allocation8 + $0x378] sm:$0xff]
    %v481 = vld [vmem:[#allocation8 + $0x380] sm:$0xff]
    %v482 = vld [vmem:[#allocation8 + $0x388] sm:$0xff]
    %v483 = vld [vmem:[#allocation8 + $0x390] sm:$0xff]
    %v484 = vld [vmem:[#allocation8 + $0x398] sm:$0xff]
    %v485 = vld [vmem:[#allocation8 + $0x3a0] sm:$0xff]
    %v486 = vld [vmem:[#allocation8 + $0x3a8] sm:$0xff]
    %v487 = vld [vmem:[#allocation8 + $0x3b0] sm:$0xff]
    %v488 = vld [vmem:[#allocation8 + $0x3b8] sm:$0xff]
    %v489 = vld [vmem:[#allocation8 + $0x3c0] sm:$0xff]
    %v490 = vld [vmem:[#allocation8 + $0x3c8] sm:$0xff]
    %v491 = vld [vmem:[#allocation8 + $0x3d0] sm:$0xff]
    %v492 = vld [vmem:[#allocation8 + $0x3d8] sm:$0xff]
    %v493 = vld [vmem:[#allocation8 + $0x3e0] sm:$0xff]
    %v494 = vld [vmem:[#allocation8 + $0x3e8] sm:$0xff]
    %v495 = vld [vmem:[#allocation8 + $0x3f0] sm:$0xff]
    %v496 = vld [vmem:[#allocation8 + $0x3f8] sm:$0xff]
    %v497 = vld [vmem:[%s4] sm:$0xf]
    %v499 = vlaneseq
    %v500 = vshrl.u32 %v499, 7
    %v501 = vsub.s32 0, %v500
    %v502 = vrot.slane %v497, %v501
    %v503 = vlaneseq
    %v504 = vshrl.u32 %v503, 7
    %v505 = vsub.s32 1, %v504
    %v506 = vrot.slane %v497, %v505
    %v507 = vlaneseq
    %v508 = vshrl.u32 %v507, 7
    %v509 = vsub.s32 2, %v508
    %v510 = vrot.slane %v497, %v509
    %v511 = vlaneseq
    %v512 = vshrl.u32 %v511, 7
    %v513 = vsub.s32 3, %v512
    %v514 = vrot.slane %v497, %v513
    %v647 = vunpack.c.l.b16 %v369
    %v648 = vunpack.c.h.b16 %v369
    %v649 = vunpack.c.l.b16 %v370
    %v650 = vunpack.c.h.b16 %v370
    %v651 = vunpack.c.l.b16 %v371
    %v652 = vunpack.c.h.b16 %v371
    %v653 = vunpack.c.l.b16 %v372
    %v654 = vunpack.c.h.b16 %v372
    %v655 = vunpack.c.l.b16 %v373
    %v656 = vunpack.c.h.b16 %v373
    %v657 = vunpack.c.l.b16 %v374
    %v658 = vunpack.c.h.b16 %v374
    %v659 = vunpack.c.l.b16 %v375
    %v660 = vunpack.c.h.b16 %v375
    %v661 = vunpack.c.l.b16 %v376
    %v662 = vunpack.c.h.b16 %v376
    %v663 = vunpack.c.l.b16 %v377
    %v664 = vunpack.c.h.b16 %v377
    %v665 = vunpack.c.l.b16 %v378
    %v666 = vunpack.c.h.b16 %v378
    %v667 = vunpack.c.l.b16 %v379
    %v668 = vunpack.c.h.b16 %v379
    %v669 = vunpack.c.l.b16 %v380
    %v670 = vunpack.c.h.b16 %v380
    %v671 = vunpack.c.l.b16 %v381
    %v672 = vunpack.c.h.b16 %v381
    %v673 = vunpack.c.l.b16 %v382
    %v674 = vunpack.c.h.b16 %v382
    %v675 = vunpack.c.l.b16 %v383
    %v676 = vunpack.c.h.b16 %v383
    %v677 = vunpack.c.l.b16 %v384
    %v678 = vunpack.c.h.b16 %v384
    %v679 = vunpack.c.l.b16 %v385
    %v680 = vunpack.c.h.b16 %v385
    %v681 = vunpack.c.l.b16 %v386
    %v682 = vunpack.c.h.b16 %v386
    %v683 = vunpack.c.l.b16 %v387
    %v684 = vunpack.c.h.b16 %v387
    %v685 = vunpack.c.l.b16 %v388
    %v686 = vunpack.c.h.b16 %v388
    %v687 = vunpack.c.l.b16 %v389
    %v688 = vunpack.c.h.b16 %v389
    %v689 = vunpack.c.l.b16 %v390
    %v690 = vunpack.c.h.b16 %v390
    %v691 = vunpack.c.l.b16 %v391
    %v692 = vunpack.c.h.b16 %v391
    %v693 = vunpack.c.l.b16 %v392
    %v694 = vunpack.c.h.b16 %v392
    %v695 = vunpack.c.l.b16 %v393
    %v696 = vunpack.c.h.b16 %v393
    %v697 = vunpack.c.l.b16 %v394
    %v698 = vunpack.c.h.b16 %v394
    %v699 = vunpack.c.l.b16 %v395
    %v700 = vunpack.c.h.b16 %v395
    %v701 = vunpack.c.l.b16 %v396
    %v702 = vunpack.c.h.b16 %v396
    %v703 = vunpack.c.l.b16 %v397
    %v704 = vunpack.c.h.b16 %v397
    %v705 = vunpack.c.l.b16 %v398
    %v706 = vunpack.c.h.b16 %v398
    %v707 = vunpack.c.l.b16 %v399
    %v708 = vunpack.c.h.b16 %v399
    %v709 = vunpack.c.l.b16 %v400
    %v710 = vunpack.c.h.b16 %v400
    %v711 = vunpack.c.l.b16 %v401
    %v712 = vunpack.c.h.b16 %v401
    %v713 = vunpack.c.l.b16 %v402
    %v714 = vunpack.c.h.b16 %v402
    %v715 = vunpack.c.l.b16 %v403
    %v716 = vunpack.c.h.b16 %v403
    %v717 = vunpack.c.l.b16 %v404
    %v718 = vunpack.c.h.b16 %v404
    %v719 = vunpack.c.l.b16 %v405
    %v720 = vunpack.c.h.b16 %v405
    %v721 = vunpack.c.l.b16 %v406
    %v722 = vunpack.c.h.b16 %v406
    %v723 = vunpack.c.l.b16 %v407
    %v724 = vunpack.c.h.b16 %v407
    %v725 = vunpack.c.l.b16 %v408
    %v726 = vunpack.c.h.b16 %v408
    %v727 = vunpack.c.l.b16 %v409
    %v728 = vunpack.c.h.b16 %v409
    %v729 = vunpack.c.l.b16 %v410
    %v730 = vunpack.c.h.b16 %v410
    %v731 = vunpack.c.l.b16 %v411
    %v732 = vunpack.c.h.b16 %v411
    %v733 = vunpack.c.l.b16 %v412
    %v734 = vunpack.c.h.b16 %v412
    %v735 = vunpack.c.l.b16 %v413
    %v736 = vunpack.c.h.b16 %v413
    %v737 = vunpack.c.l.b16 %v414
    %v738 = vunpack.c.h.b16 %v414
    %v739 = vunpack.c.l.b16 %v415
    %v740 = vunpack.c.h.b16 %v415
    %v741 = vunpack.c.l.b16 %v416
    %v742 = vunpack.c.h.b16 %v416
    %v743 = vunpack.c.l.b16 %v417
    %v744 = vunpack.c.h.b16 %v417
    %v745 = vunpack.c.l.b16 %v418
    %v746 = vunpack.c.h.b16 %v418
    %v747 = vunpack.c.l.b16 %v419
    %v748 = vunpack.c.h.b16 %v419
    %v749 = vunpack.c.l.b16 %v420
    %v750 = vunpack.c.h.b16 %v420
    %v751 = vunpack.c.l.b16 %v421
    %v752 = vunpack.c.h.b16 %v421
    %v753 = vunpack.c.l.b16 %v422
    %v754 = vunpack.c.h.b16 %v422
    %v755 = vunpack.c.l.b16 %v423
    %v756 = vunpack.c.h.b16 %v423
    %v757 = vunpack.c.l.b16 %v424
    %v758 = vunpack.c.h.b16 %v424
    %v759 = vunpack.c.l.b16 %v425
    %v760 = vunpack.c.h.b16 %v425
    %v761 = vunpack.c.l.b16 %v426
    %v762 = vunpack.c.h.b16 %v426
    %v763 = vunpack.c.l.b16 %v427
    %v764 = vunpack.c.h.b16 %v427
    %v765 = vunpack.c.l.b16 %v428
    %v766 = vunpack.c.h.b16 %v428
    %v767 = vunpack.c.l.b16 %v429
    %v768 = vunpack.c.h.b16 %v429
    %v769 = vunpack.c.l.b16 %v430
    %v770 = vunpack.c.h.b16 %v430
    %v771 = vunpack.c.l.b16 %v431
    %v772 = vunpack.c.h.b16 %v431
    %v773 = vunpack.c.l.b16 %v432
    %v774 = vunpack.c.h.b16 %v432
    %v775 = vunpack.c.l.b16 %v433
    %v776 = vunpack.c.h.b16 %v433
    %v777 = vunpack.c.l.b16 %v434
    %v778 = vunpack.c.h.b16 %v434
    %v779 = vunpack.c.l.b16 %v435
    %v780 = vunpack.c.h.b16 %v435
    %v781 = vunpack.c.l.b16 %v436
    %v782 = vunpack.c.h.b16 %v436
    %v783 = vunpack.c.l.b16 %v437
    %v784 = vunpack.c.h.b16 %v437
    %v785 = vunpack.c.l.b16 %v438
    %v786 = vunpack.c.h.b16 %v438
    %v787 = vunpack.c.l.b16 %v439
    %v788 = vunpack.c.h.b16 %v439
    %v789 = vunpack.c.l.b16 %v440
    %v790 = vunpack.c.h.b16 %v440
    %v791 = vunpack.c.l.b16 %v441
    %v792 = vunpack.c.h.b16 %v441
    %v793 = vunpack.c.l.b16 %v442
    %v794 = vunpack.c.h.b16 %v442
    %v795 = vunpack.c.l.b16 %v443
    %v796 = vunpack.c.h.b16 %v443
    %v797 = vunpack.c.l.b16 %v444
    %v798 = vunpack.c.h.b16 %v444
    %v799 = vunpack.c.l.b16 %v445
    %v800 = vunpack.c.h.b16 %v445
    %v801 = vunpack.c.l.b16 %v446
    %v802 = vunpack.c.h.b16 %v446
    %v803 = vunpack.c.l.b16 %v447
    %v804 = vunpack.c.h.b16 %v447
    %v805 = vunpack.c.l.b16 %v448
    %v806 = vunpack.c.h.b16 %v448
    %v807 = vunpack.c.l.b16 %v449
    %v808 = vunpack.c.h.b16 %v449
    %v809 = vunpack.c.l.b16 %v450
    %v810 = vunpack.c.h.b16 %v450
    %v811 = vunpack.c.l.b16 %v451
    %v812 = vunpack.c.h.b16 %v451
    %v813 = vunpack.c.l.b16 %v452
    %v814 = vunpack.c.h.b16 %v452
    %v815 = vunpack.c.l.b16 %v453
    %v816 = vunpack.c.h.b16 %v453
    %v817 = vunpack.c.l.b16 %v454
    %v818 = vunpack.c.h.b16 %v454
    %v819 = vunpack.c.l.b16 %v455
    %v820 = vunpack.c.h.b16 %v455
    %v821 = vunpack.c.l.b16 %v456
    %v822 = vunpack.c.h.b16 %v456
    %v823 = vunpack.c.l.b16 %v457
    %v824 = vunpack.c.h.b16 %v457
    %v825 = vunpack.c.l.b16 %v458
    %v826 = vunpack.c.h.b16 %v458
    %v827 = vunpack.c.l.b16 %v459
    %v828 = vunpack.c.h.b16 %v459
    %v829 = vunpack.c.l.b16 %v460
    %v830 = vunpack.c.h.b16 %v460
    %v831 = vunpack.c.l.b16 %v461
    %v832 = vunpack.c.h.b16 %v461
    %v833 = vunpack.c.l.b16 %v462
    %v834 = vunpack.c.h.b16 %v462
    %v835 = vunpack.c.l.b16 %v463
    %v836 = vunpack.c.h.b16 %v463
    %v837 = vunpack.c.l.b16 %v464
    %v838 = vunpack.c.h.b16 %v464
    %v839 = vunpack.c.l.b16 %v465
    %v840 = vunpack.c.h.b16 %v465
    %v841 = vunpack.c.l.b16 %v466
    %v842 = vunpack.c.h.b16 %v466
    %v843 = vunpack.c.l.b16 %v467
    %v844 = vunpack.c.h.b16 %v467
    %v845 = vunpack.c.l.b16 %v468
    %v846 = vunpack.c.h.b16 %v468
    %v847 = vunpack.c.l.b16 %v469
    %v848 = vunpack.c.h.b16 %v469
    %v849 = vunpack.c.l.b16 %v470
    %v850 = vunpack.c.h.b16 %v470
    %v851 = vunpack.c.l.b16 %v471
    %v852 = vunpack.c.h.b16 %v471
    %v853 = vunpack.c.l.b16 %v472
    %v854 = vunpack.c.h.b16 %v472
    %v855 = vunpack.c.l.b16 %v473
    %v856 = vunpack.c.h.b16 %v473
    %v857 = vunpack.c.l.b16 %v474
    %v858 = vunpack.c.h.b16 %v474
    %v859 = vunpack.c.l.b16 %v475
    %v860 = vunpack.c.h.b16 %v475
    %v861 = vunpack.c.l.b16 %v476
    %v862 = vunpack.c.h.b16 %v476
    %v863 = vunpack.c.l.b16 %v477
    %v864 = vunpack.c.h.b16 %v477
    %v865 = vunpack.c.l.b16 %v478
    %v866 = vunpack.c.h.b16 %v478
    %v867 = vunpack.c.l.b16 %v479
    %v868 = vunpack.c.h.b16 %v479
    %v869 = vunpack.c.l.b16 %v480
    %v870 = vunpack.c.h.b16 %v480
    %v871 = vunpack.c.l.b16 %v481
    %v872 = vunpack.c.h.b16 %v481
    %v873 = vunpack.c.l.b16 %v482
    %v874 = vunpack.c.h.b16 %v482
    %v875 = vunpack.c.l.b16 %v483
    %v876 = vunpack.c.h.b16 %v483
    %v877 = vunpack.c.l.b16 %v484
    %v878 = vunpack.c.h.b16 %v484
    %v879 = vunpack.c.l.b16 %v485
    %v880 = vunpack.c.h.b16 %v485
    %v881 = vunpack.c.l.b16 %v486
    %v882 = vunpack.c.h.b16 %v486
    %v883 = vunpack.c.l.b16 %v487
    %v884 = vunpack.c.h.b16 %v487
    %v885 = vunpack.c.l.b16 %v488
    %v886 = vunpack.c.h.b16 %v488
    %v887 = vunpack.c.l.b16 %v489
    %v888 = vunpack.c.h.b16 %v489
    %v889 = vunpack.c.l.b16 %v490
    %v890 = vunpack.c.h.b16 %v490
    %v891 = vunpack.c.l.b16 %v491
    %v892 = vunpack.c.h.b16 %v491
    %v893 = vunpack.c.l.b16 %v492
    %v894 = vunpack.c.h.b16 %v492
    %v895 = vunpack.c.l.b16 %v493
    %v896 = vunpack.c.h.b16 %v493
    %v897 = vunpack.c.l.b16 %v494
    %v898 = vunpack.c.h.b16 %v494
    %v899 = vunpack.c.l.b16 %v495
    %v900 = vunpack.c.h.b16 %v495
    %v901 = vunpack.c.l.b16 %v496
    %v902 = vunpack.c.h.b16 %v496
    %v903 = vpack.c.b16 %v651, %v647
    %v904 = vpack.c.b16 %v652, %v648
    %v905 = vpack.c.b16 %v653, %v649
    %v906 = vpack.c.b16 %v654, %v650
    %v907 = vpack.c.b16 %v659, %v655
    %v908 = vpack.c.b16 %v660, %v656
    %v909 = vpack.c.b16 %v661, %v657
    %v910 = vpack.c.b16 %v662, %v658
    %v911 = vpack.c.b16 %v667, %v663
    %v912 = vpack.c.b16 %v668, %v664
    %v913 = vpack.c.b16 %v669, %v665
    %v914 = vpack.c.b16 %v670, %v666
    %v915 = vpack.c.b16 %v675, %v671
    %v916 = vpack.c.b16 %v676, %v672
    %v917 = vpack.c.b16 %v677, %v673
    %v918 = vpack.c.b16 %v678, %v674
    %v919 = vpack.c.b16 %v683, %v679
    %v920 = vpack.c.b16 %v684, %v680
    %v921 = vpack.c.b16 %v685, %v681
    %v922 = vpack.c.b16 %v686, %v682
    %v923 = vpack.c.b16 %v691, %v687
    %v924 = vpack.c.b16 %v692, %v688
    %v925 = vpack.c.b16 %v693, %v689
    %v926 = vpack.c.b16 %v694, %v690
    %v927 = vpack.c.b16 %v699, %v695
    %v928 = vpack.c.b16 %v700, %v696
    %v929 = vpack.c.b16 %v701, %v697
    %v930 = vpack.c.b16 %v702, %v698
    %v931 = vpack.c.b16 %v707, %v703
    %v932 = vpack.c.b16 %v708, %v704
    %v933 = vpack.c.b16 %v709, %v705
    %v934 = vpack.c.b16 %v710, %v706
    %v935 = vpack.c.b16 %v715, %v711
    %v936 = vpack.c.b16 %v716, %v712
    %v937 = vpack.c.b16 %v717, %v713
    %v938 = vpack.c.b16 %v718, %v714
    %v939 = vpack.c.b16 %v723, %v719
    %v940 = vpack.c.b16 %v724, %v720
    %v941 = vpack.c.b16 %v725, %v721
    %v942 = vpack.c.b16 %v726, %v722
    %v943 = vpack.c.b16 %v731, %v727
    %v944 = vpack.c.b16 %v732, %v728
    %v945 = vpack.c.b16 %v733, %v729
    %v946 = vpack.c.b16 %v734, %v730
    %v947 = vpack.c.b16 %v739, %v735
    %v948 = vpack.c.b16 %v740, %v736
    %v949 = vpack.c.b16 %v741, %v737
    %v950 = vpack.c.b16 %v742, %v738
    %v951 = vpack.c.b16 %v747, %v743
    %v952 = vpack.c.b16 %v748, %v744
    %v953 = vpack.c.b16 %v749, %v745
    %v954 = vpack.c.b16 %v750, %v746
    %v955 = vpack.c.b16 %v755, %v751
    %v956 = vpack.c.b16 %v756, %v752
    %v957 = vpack.c.b16 %v757, %v753
    %v958 = vpack.c.b16 %v758, %v754
    %v959 = vpack.c.b16 %v763, %v759
    %v960 = vpack.c.b16 %v764, %v760
    %v961 = vpack.c.b16 %v765, %v761
    %v962 = vpack.c.b16 %v766, %v762
    %v963 = vpack.c.b16 %v771, %v767
    %v964 = vpack.c.b16 %v772, %v768
    %v965 = vpack.c.b16 %v773, %v769
    %v966 = vpack.c.b16 %v774, %v770
    %v967 = vpack.c.b16 %v779, %v775
    %v968 = vpack.c.b16 %v780, %v776
    %v969 = vpack.c.b16 %v781, %v777
    %v970 = vpack.c.b16 %v782, %v778
    %v971 = vpack.c.b16 %v787, %v783
    %v972 = vpack.c.b16 %v788, %v784
    %v973 = vpack.c.b16 %v789, %v785
    %v974 = vpack.c.b16 %v790, %v786
    %v975 = vpack.c.b16 %v795, %v791
    %v976 = vpack.c.b16 %v796, %v792
    %v977 = vpack.c.b16 %v797, %v793
    %v978 = vpack.c.b16 %v798, %v794
    %v979 = vpack.c.b16 %v803, %v799
    %v980 = vpack.c.b16 %v804, %v800
    %v981 = vpack.c.b16 %v805, %v801
    %v982 = vpack.c.b16 %v806, %v802
    %v983 = vpack.c.b16 %v811, %v807
    %v984 = vpack.c.b16 %v812, %v808
    %v985 = vpack.c.b16 %v813, %v809
    %v986 = vpack.c.b16 %v814, %v810
    %v987 = vpack.c.b16 %v819, %v815
    %v988 = vpack.c.b16 %v820, %v816
    %v989 = vpack.c.b16 %v821, %v817
    %v990 = vpack.c.b16 %v822, %v818
    %v991 = vpack.c.b16 %v827, %v823
    %v992 = vpack.c.b16 %v828, %v824
    %v993 = vpack.c.b16 %v829, %v825
    %v994 = vpack.c.b16 %v830, %v826
    %v995 = vpack.c.b16 %v835, %v831
    %v996 = vpack.c.b16 %v836, %v832
    %v997 = vpack.c.b16 %v837, %v833
    %v998 = vpack.c.b16 %v838, %v834
    %v999 = vpack.c.b16 %v843, %v839
    %v1000 = vpack.c.b16 %v844, %v840
    %v1001 = vpack.c.b16 %v845, %v841
    %v1002 = vpack.c.b16 %v846, %v842
    %v1003 = vpack.c.b16 %v851, %v847
    %v1004 = vpack.c.b16 %v852, %v848
    %v1005 = vpack.c.b16 %v853, %v849
    %v1006 = vpack.c.b16 %v854, %v850
    %v1007 = vpack.c.b16 %v859, %v855
    %v1008 = vpack.c.b16 %v860, %v856
    %v1009 = vpack.c.b16 %v861, %v857
    %v1010 = vpack.c.b16 %v862, %v858
    %v1011 = vpack.c.b16 %v867, %v863
    %v1012 = vpack.c.b16 %v868, %v864
    %v1013 = vpack.c.b16 %v869, %v865
    %v1014 = vpack.c.b16 %v870, %v866
    %v1015 = vpack.c.b16 %v875, %v871
    %v1016 = vpack.c.b16 %v876, %v872
    %v1017 = vpack.c.b16 %v877, %v873
    %v1018 = vpack.c.b16 %v878, %v874
    %v1019 = vpack.c.b16 %v883, %v879
    %v1020 = vpack.c.b16 %v884, %v880
    %v1021 = vpack.c.b16 %v885, %v881
    %v1022 = vpack.c.b16 %v886, %v882
    %v1023 = vpack.c.b16 %v891, %v887
    %v1024 = vpack.c.b16 %v892, %v888
    %v1025 = vpack.c.b16 %v893, %v889
    %v1026 = vpack.c.b16 %v894, %v890
    %v1027 = vpack.c.b16 %v899, %v895
    %v1028 = vpack.c.b16 %v900, %v896
    %v1029 = vpack.c.b16 %v901, %v897
    %v1030 = vpack.c.b16 %v902, %v898
    %1159 = vmatprep.subr.bf16.mxu0 %v932
    %1160 = vmatpush1.bf16.msra.mxu0 %v931
    %1161 = vmatprep.subr.bf16.mxu0 %v928
    %1162 = vmatpush1.bf16.msra.mxu0 %v927
    %1163 = vmatprep.subr.bf16.mxu0 %v924
    %1164 = vmatpush1.bf16.msra.mxu0 %v923
    %1165 = vmatprep.subr.bf16.mxu0 %v920
    %1166 = vmatpush1.bf16.msra.mxu0 %v919
    %1167 = vmatprep.subr.bf16.mxu0 %v916
    %1168 = vmatpush1.bf16.msra.mxu0 %v915
    %1169 = vmatprep.subr.bf16.mxu0 %v912
    %1170 = vmatpush1.bf16.msra.mxu0 %v911
    %1171 = vmatprep.subr.bf16.mxu0 %v908
    %1172 = vmatpush1.bf16.msra.mxu0 %v907
    %1173 = vmatprep.subr.bf16.mxu0 %v904
    %1174 = vmatpush1.bf16.msra.mxu0 %v903
    %1175 = vmatprep.subr.bf16.mxu0 %v964
    %1176 = vmatpush2.bf16.msra.mxu0 %v963
    %1177 = vmatprep.subr.bf16.mxu0 %v960
    %1178 = vmatpush2.bf16.msra.mxu0 %v959
    %1179 = vmatprep.subr.bf16.mxu0 %v956
    %1180 = vmatpush2.bf16.msra.mxu0 %v955
    %1181 = vmatprep.subr.bf16.mxu0 %v952
    %1182 = vmatpush2.bf16.msra.mxu0 %v951
    %1183 = vmatprep.subr.bf16.mxu0 %v948
    %1184 = vmatpush2.bf16.msra.mxu0 %v947
    %1185 = vmatprep.subr.bf16.mxu0 %v944
    %1186 = vmatpush2.bf16.msra.mxu0 %v943
    %1187 = vmatprep.subr.bf16.mxu0 %v940
    %1188 = vmatpush2.bf16.msra.mxu0 %v939
    %1189 = vmatprep.subr.bf16.mxu0 %v936
    %1190 = vmatpush2.bf16.msra.mxu0 %v935
    %1191 = vmatprep.mubr.bf16.mxu0 %v366
    %1192 = vmatmul.mubr.bf16.gmra.mxu0 %v365
    %v1193 = vpop.f32.mrf.mxu0
    %v1194 = vadd.f32 %v502, %v1193
    %v1195 = vpop.f32.mrf.mxu0
    %v1196 = vadd.f32 %v506, %v1195
    %v1197 = vpop.f32.mrf.mxu0
    %v1198 = vadd.f32 %v502, %v1197
    %v1199 = vpop.f32.mrf.mxu0
    %v1200 = vadd.f32 %v506, %v1199
    %1201 = vdwg.mxu0
    %1202 = vmatprep.subr.bf16.mxu0 %v996
    %1203 = vmatpush1.bf16.msra.mxu0 %v995
    %1204 = vmatprep.subr.bf16.mxu0 %v992
    %1205 = vmatpush1.bf16.msra.mxu0 %v991
    %1206 = vmatprep.subr.bf16.mxu0 %v988
    %1207 = vmatpush1.bf16.msra.mxu0 %v987
    %1208 = vmatprep.subr.bf16.mxu0 %v984
    %1209 = vmatpush1.bf16.msra.mxu0 %v983
    %1210 = vmatprep.subr.bf16.mxu0 %v980
    %1211 = vmatpush1.bf16.msra.mxu0 %v979
    %1212 = vmatprep.subr.bf16.mxu0 %v976
    %1213 = vmatpush1.bf16.msra.mxu0 %v975
    %1214 = vmatprep.subr.bf16.mxu0 %v972
    %1215 = vmatpush1.bf16.msra.mxu0 %v971
    %1216 = vmatprep.subr.bf16.mxu0 %v968
    %1217 = vmatpush1.bf16.msra.mxu0 %v967
    %1218 = vmatprep.subr.bf16.mxu0 %v1028
    %1219 = vmatpush2.bf16.msra.mxu0 %v1027
    %1220 = vmatprep.subr.bf16.mxu0 %v1024
    %1221 = vmatpush2.bf16.msra.mxu0 %v1023
    %1222 = vmatprep.subr.bf16.mxu0 %v1020
    %1223 = vmatpush2.bf16.msra.mxu0 %v1019
    %1224 = vmatprep.subr.bf16.mxu0 %v1016
    %1225 = vmatpush2.bf16.msra.mxu0 %v1015
    %1226 = vmatprep.subr.bf16.mxu0 %v1012
    %1227 = vmatpush2.bf16.msra.mxu0 %v1011
    %1228 = vmatprep.subr.bf16.mxu0 %v1008
    %1229 = vmatpush2.bf16.msra.mxu0 %v1007
    %1230 = vmatprep.subr.bf16.mxu0 %v1004
    %1231 = vmatpush2.bf16.msra.mxu0 %v1003
    %1232 = vmatprep.subr.bf16.mxu0 %v1000
    %1233 = vmatpush2.bf16.msra.mxu0 %v999
    %1234 = vmatprep.mubr.bf16.mxu0 %v368
    %1235 = vmatmul.mubr.bf16.gmra.mxu0 %v367
    %v1236 = vpop.f32.mrf.mxu0
    %v1237 = vadd.f32 %v1194, %v1236
    %v1238 = vpop.f32.mrf.mxu0
    %v1239 = vadd.f32 %v1196, %v1238
    %v1240 = vpop.f32.mrf.mxu0
    %v1241 = vadd.f32 %v1198, %v1240
    %v1242 = vpop.f32.mrf.mxu0
    %v1243 = vadd.f32 %v1200, %v1242
    %1244 = vdwg.mxu0
    %1245 = vmatprep.subr.bf16.mxu0 %v934
    %1246 = vmatpush1.bf16.msra.mxu0 %v933
    %1247 = vmatprep.subr.bf16.mxu0 %v930
    %1248 = vmatpush1.bf16.msra.mxu0 %v929
    %1249 = vmatprep.subr.bf16.mxu0 %v926
    %1250 = vmatpush1.bf16.msra.mxu0 %v925
    %1251 = vmatprep.subr.bf16.mxu0 %v922
    %1252 = vmatpush1.bf16.msra.mxu0 %v921
    %1253 = vmatprep.subr.bf16.mxu0 %v918
    %1254 = vmatpush1.bf16.msra.mxu0 %v917
    %1255 = vmatprep.subr.bf16.mxu0 %v914
    %1256 = vmatpush1.bf16.msra.mxu0 %v913
    %1257 = vmatprep.subr.bf16.mxu0 %v910
    %1258 = vmatpush1.bf16.msra.mxu0 %v909
    %1259 = vmatprep.subr.bf16.mxu0 %v906
    %1260 = vmatpush1.bf16.msra.mxu0 %v905
    %1261 = vmatprep.subr.bf16.mxu0 %v966
    %1262 = vmatpush2.bf16.msra.mxu0 %v965
    %1263 = vmatprep.subr.bf16.mxu0 %v962
    %1264 = vmatpush2.bf16.msra.mxu0 %v961
    %1265 = vmatprep.subr.bf16.mxu0 %v958
    %1266 = vmatpush2.bf16.msra.mxu0 %v957
    %1267 = vmatprep.subr.bf16.mxu0 %v954
    %1268 = vmatpush2.bf16.msra.mxu0 %v953
    %1269 = vmatprep.subr.bf16.mxu0 %v950
    %1270 = vmatpush2.bf16.msra.mxu0 %v949
    %1271 = vmatprep.subr.bf16.mxu0 %v946
    %1272 = vmatpush2.bf16.msra.mxu0 %v945
    %1273 = vmatprep.subr.bf16.mxu0 %v942
    %1274 = vmatpush2.bf16.msra.mxu0 %v941
    %1275 = vmatprep.subr.bf16.mxu0 %v938
    %1276 = vmatpush2.bf16.msra.mxu0 %v937
    %1277 = vmatprep.mubr.bf16.mxu0 %v366
    %1278 = vmatmul.mubr.bf16.gmra.mxu0 %v365
    %v1279 = vpop.f32.mrf.mxu0
    %v1280 = vadd.f32 %v510, %v1279
    %v1281 = vpop.f32.mrf.mxu0
    %v1282 = vadd.f32 %v514, %v1281
    %v1283 = vpop.f32.mrf.mxu0
    %v1284 = vadd.f32 %v510, %v1283
    %v1285 = vpop.f32.mrf.mxu0
    %v1286 = vadd.f32 %v514, %v1285
    %1287 = vdwg.mxu0
    %1288 = vmatprep.subr.bf16.mxu0 %v998
    %1289 = vmatpush1.bf16.msra.mxu0 %v997
    %1290 = vmatprep.subr.bf16.mxu0 %v994
    %1291 = vmatpush1.bf16.msra.mxu0 %v993
    %1292 = vmatprep.subr.bf16.mxu0 %v990
    %1293 = vmatpush1.bf16.msra.mxu0 %v989
    %1294 = vmatprep.subr.bf16.mxu0 %v986
    %1295 = vmatpush1.bf16.msra.mxu0 %v985
    %1296 = vmatprep.subr.bf16.mxu0 %v982
    %1297 = vmatpush1.bf16.msra.mxu0 %v981
    %1298 = vmatprep.subr.bf16.mxu0 %v978
    %1299 = vmatpush1.bf16.msra.mxu0 %v977
    %1300 = vmatprep.subr.bf16.mxu0 %v974
    %1301 = vmatpush1.bf16.msra.mxu0 %v973
    %1302 = vmatprep.subr.bf16.mxu0 %v970
    %1303 = vmatpush1.bf16.msra.mxu0 %v969
    %1304 = vmatprep.subr.bf16.mxu0 %v1030
    %1305 = vmatpush2.bf16.msra.mxu0 %v1029
    %1306 = vmatprep.subr.bf16.mxu0 %v1026
    %1307 = vmatpush2.bf16.msra.mxu0 %v1025
    %1308 = vmatprep.subr.bf16.mxu0 %v1022
    %1309 = vmatpush2.bf16.msra.mxu0 %v1021
    %1310 = vmatprep.subr.bf16.mxu0 %v1018
    %1311 = vmatpush2.bf16.msra.mxu0 %v1017
    %1312 = vmatprep.subr.bf16.mxu0 %v1014
    %1313 = vmatpush2.bf16.msra.mxu0 %v1013
    %1314 = vmatprep.subr.bf16.mxu0 %v1010
    %1315 = vmatpush2.bf16.msra.mxu0 %v1009
    %1316 = vmatprep.subr.bf16.mxu0 %v1006
    %1317 = vmatpush2.bf16.msra.mxu0 %v1005
    %1318 = vmatprep.subr.bf16.mxu0 %v1002
    %1319 = vmatpush2.bf16.msra.mxu0 %v1001
    %1320 = vmatprep.mubr.bf16.mxu0 %v368
    %1321 = vmatmul.mubr.bf16.gmra.mxu0 %v367
    %v1322 = vpop.f32.mrf.mxu0
    %v1323 = vadd.f32 %v1280, %v1322
    %v1324 = vpop.f32.mrf.mxu0
    %v1325 = vadd.f32 %v1282, %v1324
    %v1326 = vpop.f32.mrf.mxu0
    %v1327 = vadd.f32 %v1284, %v1326
    %v1328 = vpop.f32.mrf.mxu0
    %v1329 = vadd.f32 %v1286, %v1328
    %1330 = vdwg.mxu0
    %v1331 = vmax.f32 %v1237, 0.0
    %v1332 = vmax.f32 %v1239, 0.0
    %v1333 = vmax.f32 %v1323, 0.0
    %v1334 = vmax.f32 %v1325, 0.0
    %v1335 = vmax.f32 %v1241, 0.0
    %v1336 = vmax.f32 %v1243, 0.0
    %v1337 = vmax.f32 %v1327, 0.0
    %v1338 = vmax.f32 %v1329, 0.0
    %v1339 = vpack.c.bf16 %v1335, %v1331
    %v1340 = vpack.c.bf16 %v1336, %v1332
    %v1341 = vpack.c.bf16 %v1337, %v1333
    %v1342 = vpack.c.bf16 %v1338, %v1334
    %v1343 = vld [vmem:[#allocation10] sm:$0xff]
    %v1344 = vld [vmem:[#allocation10 + $0x8] sm:$0xff]
    %v1345 = vld [vmem:[#allocation10 + $0x10] sm:$0xff]
    %v1346 = vld [vmem:[#allocation10 + $0x18] sm:$0xff]
    %v1347 = vld [vmem:[#allocation10 + $0x20] sm:$0xff]
    %v1348 = vld [vmem:[#allocation10 + $0x28] sm:$0xff]
    %v1349 = vld [vmem:[#allocation10 + $0x30] sm:$0xff]
    %v1350 = vld [vmem:[#allocation10 + $0x38] sm:$0xff]
    %v1351 = vld [vmem:[#allocation10 + $0x40] sm:$0xff]
    %v1352 = vld [vmem:[#allocation10 + $0x48] sm:$0xff]
    %v1353 = vld [vmem:[#allocation10 + $0x50] sm:$0xff]
    %v1354 = vld [vmem:[#allocation10 + $0x58] sm:$0xff]
    %v1355 = vld [vmem:[#allocation10 + $0x60] sm:$0xff]
    %v1356 = vld [vmem:[#allocation10 + $0x68] sm:$0xff]
    %v1357 = vld [vmem:[#allocation10 + $0x70] sm:$0xff]
    %v1358 = vld [vmem:[#allocation10 + $0x78] sm:$0xff]
    %v1359 = vld [vmem:[#allocation10 + $0x80] sm:$0xff]
    %v1360 = vld [vmem:[#allocation10 + $0x88] sm:$0xff]
    %v1361 = vld [vmem:[#allocation10 + $0x90] sm:$0xff]
    %v1362 = vld [vmem:[#allocation10 + $0x98] sm:$0xff]
    %v1363 = vld [vmem:[#allocation10 + $0xa0] sm:$0xff]
    %v1364 = vld [vmem:[#allocation10 + $0xa8] sm:$0xff]
    %v1365 = vld [vmem:[#allocation10 + $0xb0] sm:$0xff]
    %v1366 = vld [vmem:[#allocation10 + $0xb8] sm:$0xff]
    %v1367 = vld [vmem:[#allocation10 + $0xc0] sm:$0xff]
    %v1368 = vld [vmem:[#allocation10 + $0xc8] sm:$0xff]
    %v1369 = vld [vmem:[#allocation10 + $0xd0] sm:$0xff]
    %v1370 = vld [vmem:[#allocation10 + $0xd8] sm:$0xff]
    %v1371 = vld [vmem:[#allocation10 + $0xe0] sm:$0xff]
    %v1372 = vld [vmem:[#allocation10 + $0xe8] sm:$0xff]
    %v1373 = vld [vmem:[#allocation10 + $0xf0] sm:$0xff]
    %v1374 = vld [vmem:[#allocation10 + $0xf8] sm:$0xff]
    %v1375 = vld [vmem:[#allocation10 + $0x100] sm:$0xff]
    %v1376 = vld [vmem:[#allocation10 + $0x108] sm:$0xff]
    %v1377 = vld [vmem:[#allocation10 + $0x110] sm:$0xff]
    %v1378 = vld [vmem:[#allocation10 + $0x118] sm:$0xff]
    %v1379 = vld [vmem:[#allocation10 + $0x120] sm:$0xff]
    %v1380 = vld [vmem:[#allocation10 + $0x128] sm:$0xff]
    %v1381 = vld [vmem:[#allocation10 + $0x130] sm:$0xff]
    %v1382 = vld [vmem:[#allocation10 + $0x138] sm:$0xff]
    %v1383 = vld [vmem:[#allocation10 + $0x140] sm:$0xff]
    %v1384 = vld [vmem:[#allocation10 + $0x148] sm:$0xff]
    %v1385 = vld [vmem:[#allocation10 + $0x150] sm:$0xff]
    %v1386 = vld [vmem:[#allocation10 + $0x158] sm:$0xff]
    %v1387 = vld [vmem:[#allocation10 + $0x160] sm:$0xff]
    %v1388 = vld [vmem:[#allocation10 + $0x168] sm:$0xff]
    %v1389 = vld [vmem:[#allocation10 + $0x170] sm:$0xff]
    %v1390 = vld [vmem:[#allocation10 + $0x178] sm:$0xff]
    %v1391 = vld [vmem:[#allocation10 + $0x180] sm:$0xff]
    %v1392 = vld [vmem:[#allocation10 + $0x188] sm:$0xff]
    %v1393 = vld [vmem:[#allocation10 + $0x190] sm:$0xff]
    %v1394 = vld [vmem:[#allocation10 + $0x198] sm:$0xff]
    %v1395 = vld [vmem:[#allocation10 + $0x1a0] sm:$0xff]
    %v1396 = vld [vmem:[#allocation10 + $0x1a8] sm:$0xff]
    %v1397 = vld [vmem:[#allocation10 + $0x1b0] sm:$0xff]
    %v1398 = vld [vmem:[#allocation10 + $0x1b8] sm:$0xff]
    %v1399 = vld [vmem:[#allocation10 + $0x1c0] sm:$0xff]
    %v1400 = vld [vmem:[#allocation10 + $0x1c8] sm:$0xff]
    %v1401 = vld [vmem:[#allocation10 + $0x1d0] sm:$0xff]
    %v1402 = vld [vmem:[#allocation10 + $0x1d8] sm:$0xff]
    %v1403 = vld [vmem:[#allocation10 + $0x1e0] sm:$0xff]
    %v1404 = vld [vmem:[#allocation10 + $0x1e8] sm:$0xff]
    %v1405 = vld [vmem:[#allocation10 + $0x1f0] sm:$0xff]
    %v1406 = vld [vmem:[#allocation10 + $0x1f8] sm:$0xff]
    %v1407 = vld [vmem:[#allocation10 + $0x200] sm:$0xff]
    %v1408 = vld [vmem:[#allocation10 + $0x208] sm:$0xff]
    %v1409 = vld [vmem:[#allocation10 + $0x210] sm:$0xff]
    %v1410 = vld [vmem:[#allocation10 + $0x218] sm:$0xff]
    %v1411 = vld [vmem:[#allocation10 + $0x220] sm:$0xff]
    %v1412 = vld [vmem:[#allocation10 + $0x228] sm:$0xff]
    %v1413 = vld [vmem:[#allocation10 + $0x230] sm:$0xff]
    %v1414 = vld [vmem:[#allocation10 + $0x238] sm:$0xff]
    %v1415 = vld [vmem:[#allocation10 + $0x240] sm:$0xff]
    %v1416 = vld [vmem:[#allocation10 + $0x248] sm:$0xff]
    %v1417 = vld [vmem:[#allocation10 + $0x250] sm:$0xff]
    %v1418 = vld [vmem:[#allocation10 + $0x258] sm:$0xff]
    %v1419 = vld [vmem:[#allocation10 + $0x260] sm:$0xff]
    %v1420 = vld [vmem:[#allocation10 + $0x268] sm:$0xff]
    %v1421 = vld [vmem:[#allocation10 + $0x270] sm:$0xff]
    %v1422 = vld [vmem:[#allocation10 + $0x278] sm:$0xff]
    %v1423 = vld [vmem:[#allocation10 + $0x280] sm:$0xff]
    %v1424 = vld [vmem:[#allocation10 + $0x288] sm:$0xff]
    %v1425 = vld [vmem:[#allocation10 + $0x290] sm:$0xff]
    %v1426 = vld [vmem:[#allocation10 + $0x298] sm:$0xff]
    %v1427 = vld [vmem:[#allocation10 + $0x2a0] sm:$0xff]
    %v1428 = vld [vmem:[#allocation10 + $0x2a8] sm:$0xff]
    %v1429 = vld [vmem:[#allocation10 + $0x2b0] sm:$0xff]
    %v1430 = vld [vmem:[#allocation10 + $0x2b8] sm:$0xff]
    %v1431 = vld [vmem:[#allocation10 + $0x2c0] sm:$0xff]
    %v1432 = vld [vmem:[#allocation10 + $0x2c8] sm:$0xff]
    %v1433 = vld [vmem:[#allocation10 + $0x2d0] sm:$0xff]
    %v1434 = vld [vmem:[#allocation10 + $0x2d8] sm:$0xff]
    %v1435 = vld [vmem:[#allocation10 + $0x2e0] sm:$0xff]
    %v1436 = vld [vmem:[#allocation10 + $0x2e8] sm:$0xff]
    %v1437 = vld [vmem:[#allocation10 + $0x2f0] sm:$0xff]
    %v1438 = vld [vmem:[#allocation10 + $0x2f8] sm:$0xff]
    %v1439 = vld [vmem:[#allocation10 + $0x300] sm:$0xff]
    %v1440 = vld [vmem:[#allocation10 + $0x308] sm:$0xff]
    %v1441 = vld [vmem:[#allocation10 + $0x310] sm:$0xff]
    %v1442 = vld [vmem:[#allocation10 + $0x318] sm:$0xff]
    %v1443 = vld [vmem:[#allocation10 + $0x320] sm:$0xff]
    %v1444 = vld [vmem:[#allocation10 + $0x328] sm:$0xff]
    %v1445 = vld [vmem:[#allocation10 + $0x330] sm:$0xff]
    %v1446 = vld [vmem:[#allocation10 + $0x338] sm:$0xff]
    %v1447 = vld [vmem:[#allocation10 + $0x340] sm:$0xff]
    %v1448 = vld [vmem:[#allocation10 + $0x348] sm:$0xff]
    %v1449 = vld [vmem:[#allocation10 + $0x350] sm:$0xff]
    %v1450 = vld [vmem:[#allocation10 + $0x358] sm:$0xff]
    %v1451 = vld [vmem:[#allocation10 + $0x360] sm:$0xff]
    %v1452 = vld [vmem:[#allocation10 + $0x368] sm:$0xff]
    %v1453 = vld [vmem:[#allocation10 + $0x370] sm:$0xff]
    %v1454 = vld [vmem:[#allocation10 + $0x378] sm:$0xff]
    %v1455 = vld [vmem:[#allocation10 + $0x380] sm:$0xff]
    %v1456 = vld [vmem:[#allocation10 + $0x388] sm:$0xff]
    %v1457 = vld [vmem:[#allocation10 + $0x390] sm:$0xff]
    %v1458 = vld [vmem:[#allocation10 + $0x398] sm:$0xff]
    %v1459 = vld [vmem:[#allocation10 + $0x3a0] sm:$0xff]
    %v1460 = vld [vmem:[#allocation10 + $0x3a8] sm:$0xff]
    %v1461 = vld [vmem:[#allocation10 + $0x3b0] sm:$0xff]
    %v1462 = vld [vmem:[#allocation10 + $0x3b8] sm:$0xff]
    %v1463 = vld [vmem:[#allocation10 + $0x3c0] sm:$0xff]
    %v1464 = vld [vmem:[#allocation10 + $0x3c8] sm:$0xff]
    %v1465 = vld [vmem:[#allocation10 + $0x3d0] sm:$0xff]
    %v1466 = vld [vmem:[#allocation10 + $0x3d8] sm:$0xff]
    %v1467 = vld [vmem:[#allocation10 + $0x3e0] sm:$0xff]
    %v1468 = vld [vmem:[#allocation10 + $0x3e8] sm:$0xff]
    %v1469 = vld [vmem:[#allocation10 + $0x3f0] sm:$0xff]
    %v1470 = vld [vmem:[#allocation10 + $0x3f8] sm:$0xff]
    %v1471 = vld [vmem:[%s6] sm:$0xf]
    %v1473 = vlaneseq
    %v1474 = vshrl.u32 %v1473, 7
    %v1475 = vsub.s32 0, %v1474
    %v1476 = vrot.slane %v1471, %v1475
    %v1477 = vlaneseq
    %v1478 = vshrl.u32 %v1477, 7
    %v1479 = vsub.s32 1, %v1478
    %v1480 = vrot.slane %v1471, %v1479
    %v1481 = vlaneseq
    %v1482 = vshrl.u32 %v1481, 7
    %v1483 = vsub.s32 2, %v1482
    %v1484 = vrot.slane %v1471, %v1483
    %v1485 = vlaneseq
    %v1486 = vshrl.u32 %v1485, 7
    %v1487 = vsub.s32 3, %v1486
    %v1488 = vrot.slane %v1471, %v1487
    %v1621 = vunpack.c.l.b16 %v1343
    %v1622 = vunpack.c.h.b16 %v1343
    %v1623 = vunpack.c.l.b16 %v1344
    %v1624 = vunpack.c.h.b16 %v1344
    %v1625 = vunpack.c.l.b16 %v1345
    %v1626 = vunpack.c.h.b16 %v1345
    %v1627 = vunpack.c.l.b16 %v1346
    %v1628 = vunpack.c.h.b16 %v1346
    %v1629 = vunpack.c.l.b16 %v1347
    %v1630 = vunpack.c.h.b16 %v1347
    %v1631 = vunpack.c.l.b16 %v1348
    %v1632 = vunpack.c.h.b16 %v1348
    %v1633 = vunpack.c.l.b16 %v1349
    %v1634 = vunpack.c.h.b16 %v1349
    %v1635 = vunpack.c.l.b16 %v1350
    %v1636 = vunpack.c.h.b16 %v1350
    %v1637 = vunpack.c.l.b16 %v1351
    %v1638 = vunpack.c.h.b16 %v1351
    %v1639 = vunpack.c.l.b16 %v1352
    %v1640 = vunpack.c.h.b16 %v1352
    %v1641 = vunpack.c.l.b16 %v1353
    %v1642 = vunpack.c.h.b16 %v1353
    %v1643 = vunpack.c.l.b16 %v1354
    %v1644 = vunpack.c.h.b16 %v1354
    %v1645 = vunpack.c.l.b16 %v1355
    %v1646 = vunpack.c.h.b16 %v1355
    %v1647 = vunpack.c.l.b16 %v1356
    %v1648 = vunpack.c.h.b16 %v1356
    %v1649 = vunpack.c.l.b16 %v1357
    %v1650 = vunpack.c.h.b16 %v1357
    %v1651 = vunpack.c.l.b16 %v1358
    %v1652 = vunpack.c.h.b16 %v1358
    %v1653 = vunpack.c.l.b16 %v1359
    %v1654 = vunpack.c.h.b16 %v1359
    %v1655 = vunpack.c.l.b16 %v1360
    %v1656 = vunpack.c.h.b16 %v1360
    %v1657 = vunpack.c.l.b16 %v1361
    %v1658 = vunpack.c.h.b16 %v1361
    %v1659 = vunpack.c.l.b16 %v1362
    %v1660 = vunpack.c.h.b16 %v1362
    %v1661 = vunpack.c.l.b16 %v1363
    %v1662 = vunpack.c.h.b16 %v1363
    %v1663 = vunpack.c.l.b16 %v1364
    %v1664 = vunpack.c.h.b16 %v1364
    %v1665 = vunpack.c.l.b16 %v1365
    %v1666 = vunpack.c.h.b16 %v1365
    %v1667 = vunpack.c.l.b16 %v1366
    %v1668 = vunpack.c.h.b16 %v1366
    %v1669 = vunpack.c.l.b16 %v1367
    %v1670 = vunpack.c.h.b16 %v1367
    %v1671 = vunpack.c.l.b16 %v1368
    %v1672 = vunpack.c.h.b16 %v1368
    %v1673 = vunpack.c.l.b16 %v1369
    %v1674 = vunpack.c.h.b16 %v1369
    %v1675 = vunpack.c.l.b16 %v1370
    %v1676 = vunpack.c.h.b16 %v1370
    %v1677 = vunpack.c.l.b16 %v1371
    %v1678 = vunpack.c.h.b16 %v1371
    %v1679 = vunpack.c.l.b16 %v1372
    %v1680 = vunpack.c.h.b16 %v1372
    %v1681 = vunpack.c.l.b16 %v1373
    %v1682 = vunpack.c.h.b16 %v1373
    %v1683 = vunpack.c.l.b16 %v1374
    %v1684 = vunpack.c.h.b16 %v1374
    %v1685 = vunpack.c.l.b16 %v1375
    %v1686 = vunpack.c.h.b16 %v1375
    %v1687 = vunpack.c.l.b16 %v1376
    %v1688 = vunpack.c.h.b16 %v1376
    %v1689 = vunpack.c.l.b16 %v1377
    %v1690 = vunpack.c.h.b16 %v1377
    %v1691 = vunpack.c.l.b16 %v1378
    %v1692 = vunpack.c.h.b16 %v1378
    %v1693 = vunpack.c.l.b16 %v1379
    %v1694 = vunpack.c.h.b16 %v1379
    %v1695 = vunpack.c.l.b16 %v1380
    %v1696 = vunpack.c.h.b16 %v1380
    %v1697 = vunpack.c.l.b16 %v1381
    %v1698 = vunpack.c.h.b16 %v1381
    %v1699 = vunpack.c.l.b16 %v1382
    %v1700 = vunpack.c.h.b16 %v1382
    %v1701 = vunpack.c.l.b16 %v1383
    %v1702 = vunpack.c.h.b16 %v1383
    %v1703 = vunpack.c.l.b16 %v1384
    %v1704 = vunpack.c.h.b16 %v1384
    %v1705 = vunpack.c.l.b16 %v1385
    %v1706 = vunpack.c.h.b16 %v1385
    %v1707 = vunpack.c.l.b16 %v1386
    %v1708 = vunpack.c.h.b16 %v1386
    %v1709 = vunpack.c.l.b16 %v1387
    %v1710 = vunpack.c.h.b16 %v1387
    %v1711 = vunpack.c.l.b16 %v1388
    %v1712 = vunpack.c.h.b16 %v1388
    %v1713 = vunpack.c.l.b16 %v1389
    %v1714 = vunpack.c.h.b16 %v1389
    %v1715 = vunpack.c.l.b16 %v1390
    %v1716 = vunpack.c.h.b16 %v1390
    %v1717 = vunpack.c.l.b16 %v1391
    %v1718 = vunpack.c.h.b16 %v1391
    %v1719 = vunpack.c.l.b16 %v1392
    %v1720 = vunpack.c.h.b16 %v1392
    %v1721 = vunpack.c.l.b16 %v1393
    %v1722 = vunpack.c.h.b16 %v1393
    %v1723 = vunpack.c.l.b16 %v1394
    %v1724 = vunpack.c.h.b16 %v1394
    %v1725 = vunpack.c.l.b16 %v1395
    %v1726 = vunpack.c.h.b16 %v1395
    %v1727 = vunpack.c.l.b16 %v1396
    %v1728 = vunpack.c.h.b16 %v1396
    %v1729 = vunpack.c.l.b16 %v1397
    %v1730 = vunpack.c.h.b16 %v1397
    %v1731 = vunpack.c.l.b16 %v1398
    %v1732 = vunpack.c.h.b16 %v1398
    %v1733 = vunpack.c.l.b16 %v1399
    %v1734 = vunpack.c.h.b16 %v1399
    %v1735 = vunpack.c.l.b16 %v1400
    %v1736 = vunpack.c.h.b16 %v1400
    %v1737 = vunpack.c.l.b16 %v1401
    %v1738 = vunpack.c.h.b16 %v1401
    %v1739 = vunpack.c.l.b16 %v1402
    %v1740 = vunpack.c.h.b16 %v1402
    %v1741 = vunpack.c.l.b16 %v1403
    %v1742 = vunpack.c.h.b16 %v1403
    %v1743 = vunpack.c.l.b16 %v1404
    %v1744 = vunpack.c.h.b16 %v1404
    %v1745 = vunpack.c.l.b16 %v1405
    %v1746 = vunpack.c.h.b16 %v1405
    %v1747 = vunpack.c.l.b16 %v1406
    %v1748 = vunpack.c.h.b16 %v1406
    %v1749 = vunpack.c.l.b16 %v1407
    %v1750 = vunpack.c.h.b16 %v1407
    %v1751 = vunpack.c.l.b16 %v1408
    %v1752 = vunpack.c.h.b16 %v1408
    %v1753 = vunpack.c.l.b16 %v1409
    %v1754 = vunpack.c.h.b16 %v1409
    %v1755 = vunpack.c.l.b16 %v1410
    %v1756 = vunpack.c.h.b16 %v1410
    %v1757 = vunpack.c.l.b16 %v1411
    %v1758 = vunpack.c.h.b16 %v1411
    %v1759 = vunpack.c.l.b16 %v1412
    %v1760 = vunpack.c.h.b16 %v1412
    %v1761 = vunpack.c.l.b16 %v1413
    %v1762 = vunpack.c.h.b16 %v1413
    %v1763 = vunpack.c.l.b16 %v1414
    %v1764 = vunpack.c.h.b16 %v1414
    %v1765 = vunpack.c.l.b16 %v1415
    %v1766 = vunpack.c.h.b16 %v1415
    %v1767 = vunpack.c.l.b16 %v1416
    %v1768 = vunpack.c.h.b16 %v1416
    %v1769 = vunpack.c.l.b16 %v1417
    %v1770 = vunpack.c.h.b16 %v1417
    %v1771 = vunpack.c.l.b16 %v1418
    %v1772 = vunpack.c.h.b16 %v1418
    %v1773 = vunpack.c.l.b16 %v1419
    %v1774 = vunpack.c.h.b16 %v1419
    %v1775 = vunpack.c.l.b16 %v1420
    %v1776 = vunpack.c.h.b16 %v1420
    %v1777 = vunpack.c.l.b16 %v1421
    %v1778 = vunpack.c.h.b16 %v1421
    %v1779 = vunpack.c.l.b16 %v1422
    %v1780 = vunpack.c.h.b16 %v1422
    %v1781 = vunpack.c.l.b16 %v1423
    %v1782 = vunpack.c.h.b16 %v1423
    %v1783 = vunpack.c.l.b16 %v1424
    %v1784 = vunpack.c.h.b16 %v1424
    %v1785 = vunpack.c.l.b16 %v1425
    %v1786 = vunpack.c.h.b16 %v1425
    %v1787 = vunpack.c.l.b16 %v1426
    %v1788 = vunpack.c.h.b16 %v1426
    %v1789 = vunpack.c.l.b16 %v1427
    %v1790 = vunpack.c.h.b16 %v1427
    %v1791 = vunpack.c.l.b16 %v1428
    %v1792 = vunpack.c.h.b16 %v1428
    %v1793 = vunpack.c.l.b16 %v1429
    %v1794 = vunpack.c.h.b16 %v1429
    %v1795 = vunpack.c.l.b16 %v1430
    %v1796 = vunpack.c.h.b16 %v1430
    %v1797 = vunpack.c.l.b16 %v1431
    %v1798 = vunpack.c.h.b16 %v1431
    %v1799 = vunpack.c.l.b16 %v1432
    %v1800 = vunpack.c.h.b16 %v1432
    %v1801 = vunpack.c.l.b16 %v1433
    %v1802 = vunpack.c.h.b16 %v1433
    %v1803 = vunpack.c.l.b16 %v1434
    %v1804 = vunpack.c.h.b16 %v1434
    %v1805 = vunpack.c.l.b16 %v1435
    %v1806 = vunpack.c.h.b16 %v1435
    %v1807 = vunpack.c.l.b16 %v1436
    %v1808 = vunpack.c.h.b16 %v1436
    %v1809 = vunpack.c.l.b16 %v1437
    %v1810 = vunpack.c.h.b16 %v1437
    %v1811 = vunpack.c.l.b16 %v1438
    %v1812 = vunpack.c.h.b16 %v1438
    %v1813 = vunpack.c.l.b16 %v1439
    %v1814 = vunpack.c.h.b16 %v1439
    %v1815 = vunpack.c.l.b16 %v1440
    %v1816 = vunpack.c.h.b16 %v1440
    %v1817 = vunpack.c.l.b16 %v1441
    %v1818 = vunpack.c.h.b16 %v1441
    %v1819 = vunpack.c.l.b16 %v1442
    %v1820 = vunpack.c.h.b16 %v1442
    %v1821 = vunpack.c.l.b16 %v1443
    %v1822 = vunpack.c.h.b16 %v1443
    %v1823 = vunpack.c.l.b16 %v1444
    %v1824 = vunpack.c.h.b16 %v1444
    %v1825 = vunpack.c.l.b16 %v1445
    %v1826 = vunpack.c.h.b16 %v1445
    %v1827 = vunpack.c.l.b16 %v1446
    %v1828 = vunpack.c.h.b16 %v1446
    %v1829 = vunpack.c.l.b16 %v1447
    %v1830 = vunpack.c.h.b16 %v1447
    %v1831 = vunpack.c.l.b16 %v1448
    %v1832 = vunpack.c.h.b16 %v1448
    %v1833 = vunpack.c.l.b16 %v1449
    %v1834 = vunpack.c.h.b16 %v1449
    %v1835 = vunpack.c.l.b16 %v1450
    %v1836 = vunpack.c.h.b16 %v1450
    %v1837 = vunpack.c.l.b16 %v1451
    %v1838 = vunpack.c.h.b16 %v1451
    %v1839 = vunpack.c.l.b16 %v1452
    %v1840 = vunpack.c.h.b16 %v1452
    %v1841 = vunpack.c.l.b16 %v1453
    %v1842 = vunpack.c.h.b16 %v1453
    %v1843 = vunpack.c.l.b16 %v1454
    %v1844 = vunpack.c.h.b16 %v1454
    %v1845 = vunpack.c.l.b16 %v1455
    %v1846 = vunpack.c.h.b16 %v1455
    %v1847 = vunpack.c.l.b16 %v1456
    %v1848 = vunpack.c.h.b16 %v1456
    %v1849 = vunpack.c.l.b16 %v1457
    %v1850 = vunpack.c.h.b16 %v1457
    %v1851 = vunpack.c.l.b16 %v1458
    %v1852 = vunpack.c.h.b16 %v1458
    %v1853 = vunpack.c.l.b16 %v1459
    %v1854 = vunpack.c.h.b16 %v1459
    %v1855 = vunpack.c.l.b16 %v1460
    %v1856 = vunpack.c.h.b16 %v1460
    %v1857 = vunpack.c.l.b16 %v1461
    %v1858 = vunpack.c.h.b16 %v1461
    %v1859 = vunpack.c.l.b16 %v1462
    %v1860 = vunpack.c.h.b16 %v1462
    %v1861 = vunpack.c.l.b16 %v1463
    %v1862 = vunpack.c.h.b16 %v1463
    %v1863 = vunpack.c.l.b16 %v1464
    %v1864 = vunpack.c.h.b16 %v1464
    %v1865 = vunpack.c.l.b16 %v1465
    %v1866 = vunpack.c.h.b16 %v1465
    %v1867 = vunpack.c.l.b16 %v1466
    %v1868 = vunpack.c.h.b16 %v1466
    %v1869 = vunpack.c.l.b16 %v1467
    %v1870 = vunpack.c.h.b16 %v1467
    %v1871 = vunpack.c.l.b16 %v1468
    %v1872 = vunpack.c.h.b16 %v1468
    %v1873 = vunpack.c.l.b16 %v1469
    %v1874 = vunpack.c.h.b16 %v1469
    %v1875 = vunpack.c.l.b16 %v1470
    %v1876 = vunpack.c.h.b16 %v1470
    %v1877 = vpack.c.b16 %v1625, %v1621
    %v1878 = vpack.c.b16 %v1626, %v1622
    %v1879 = vpack.c.b16 %v1627, %v1623
    %v1880 = vpack.c.b16 %v1628, %v1624
    %v1881 = vpack.c.b16 %v1633, %v1629
    %v1882 = vpack.c.b16 %v1634, %v1630
    %v1883 = vpack.c.b16 %v1635, %v1631
    %v1884 = vpack.c.b16 %v1636, %v1632
    %v1885 = vpack.c.b16 %v1641, %v1637
    %v1886 = vpack.c.b16 %v1642, %v1638
    %v1887 = vpack.c.b16 %v1643, %v1639
    %v1888 = vpack.c.b16 %v1644, %v1640
    %v1889 = vpack.c.b16 %v1649, %v1645
    %v1890 = vpack.c.b16 %v1650, %v1646
    %v1891 = vpack.c.b16 %v1651, %v1647
    %v1892 = vpack.c.b16 %v1652, %v1648
    %v1893 = vpack.c.b16 %v1657, %v1653
    %v1894 = vpack.c.b16 %v1658, %v1654
    %v1895 = vpack.c.b16 %v1659, %v1655
    %v1896 = vpack.c.b16 %v1660, %v1656
    %v1897 = vpack.c.b16 %v1665, %v1661
    %v1898 = vpack.c.b16 %v1666, %v1662
    %v1899 = vpack.c.b16 %v1667, %v1663
    %v1900 = vpack.c.b16 %v1668, %v1664
    %v1901 = vpack.c.b16 %v1673, %v1669
    %v1902 = vpack.c.b16 %v1674, %v1670
    %v1903 = vpack.c.b16 %v1675, %v1671
    %v1904 = vpack.c.b16 %v1676, %v1672
    %v1905 = vpack.c.b16 %v1681, %v1677
    %v1906 = vpack.c.b16 %v1682, %v1678
    %v1907 = vpack.c.b16 %v1683, %v1679
    %v1908 = vpack.c.b16 %v1684, %v1680
    %v1909 = vpack.c.b16 %v1689, %v1685
    %v1910 = vpack.c.b16 %v1690, %v1686
    %v1911 = vpack.c.b16 %v1691, %v1687
    %v1912 = vpack.c.b16 %v1692, %v1688
    %v1913 = vpack.c.b16 %v1697, %v1693
    %v1914 = vpack.c.b16 %v1698, %v1694
    %v1915 = vpack.c.b16 %v1699, %v1695
    %v1916 = vpack.c.b16 %v1700, %v1696
    %v1917 = vpack.c.b16 %v1705, %v1701
    %v1918 = vpack.c.b16 %v1706, %v1702
    %v1919 = vpack.c.b16 %v1707, %v1703
    %v1920 = vpack.c.b16 %v1708, %v1704
    %v1921 = vpack.c.b16 %v1713, %v1709
    %v1922 = vpack.c.b16 %v1714, %v1710
    %v1923 = vpack.c.b16 %v1715, %v1711
    %v1924 = vpack.c.b16 %v1716, %v1712
    %v1925 = vpack.c.b16 %v1721, %v1717
    %v1926 = vpack.c.b16 %v1722, %v1718
    %v1927 = vpack.c.b16 %v1723, %v1719
    %v1928 = vpack.c.b16 %v1724, %v1720
    %v1929 = vpack.c.b16 %v1729, %v1725
    %v1930 = vpack.c.b16 %v1730, %v1726
    %v1931 = vpack.c.b16 %v1731, %v1727
    %v1932 = vpack.c.b16 %v1732, %v1728
    %v1933 = vpack.c.b16 %v1737, %v1733
    %v1934 = vpack.c.b16 %v1738, %v1734
    %v1935 = vpack.c.b16 %v1739, %v1735
    %v1936 = vpack.c.b16 %v1740, %v1736
    %v1937 = vpack.c.b16 %v1745, %v1741
    %v1938 = vpack.c.b16 %v1746, %v1742
    %v1939 = vpack.c.b16 %v1747, %v1743
    %v1940 = vpack.c.b16 %v1748, %v1744
    %v1941 = vpack.c.b16 %v1753, %v1749
    %v1942 = vpack.c.b16 %v1754, %v1750
    %v1943 = vpack.c.b16 %v1755, %v1751
    %v1944 = vpack.c.b16 %v1756, %v1752
    %v1945 = vpack.c.b16 %v1761, %v1757
    %v1946 = vpack.c.b16 %v1762, %v1758
    %v1947 = vpack.c.b16 %v1763, %v1759
    %v1948 = vpack.c.b16 %v1764, %v1760
    %v1949 = vpack.c.b16 %v1769, %v1765
    %v1950 = vpack.c.b16 %v1770, %v1766
    %v1951 = vpack.c.b16 %v1771, %v1767
    %v1952 = vpack.c.b16 %v1772, %v1768
    %v1953 = vpack.c.b16 %v1777, %v1773
    %v1954 = vpack.c.b16 %v1778, %v1774
    %v1955 = vpack.c.b16 %v1779, %v1775
    %v1956 = vpack.c.b16 %v1780, %v1776
    %v1957 = vpack.c.b16 %v1785, %v1781
    %v1958 = vpack.c.b16 %v1786, %v1782
    %v1959 = vpack.c.b16 %v1787, %v1783
    %v1960 = vpack.c.b16 %v1788, %v1784
    %v1961 = vpack.c.b16 %v1793, %v1789
    %v1962 = vpack.c.b16 %v1794, %v1790
    %v1963 = vpack.c.b16 %v1795, %v1791
    %v1964 = vpack.c.b16 %v1796, %v1792
    %v1965 = vpack.c.b16 %v1801, %v1797
    %v1966 = vpack.c.b16 %v1802, %v1798
    %v1967 = vpack.c.b16 %v1803, %v1799
    %v1968 = vpack.c.b16 %v1804, %v1800
    %v1969 = vpack.c.b16 %v1809, %v1805
    %v1970 = vpack.c.b16 %v1810, %v1806
    %v1971 = vpack.c.b16 %v1811, %v1807
    %v1972 = vpack.c.b16 %v1812, %v1808
    %v1973 = vpack.c.b16 %v1817, %v1813
    %v1974 = vpack.c.b16 %v1818, %v1814
    %v1975 = vpack.c.b16 %v1819, %v1815
    %v1976 = vpack.c.b16 %v1820, %v1816
    %v1977 = vpack.c.b16 %v1825, %v1821
    %v1978 = vpack.c.b16 %v1826, %v1822
    %v1979 = vpack.c.b16 %v1827, %v1823
    %v1980 = vpack.c.b16 %v1828, %v1824
    %v1981 = vpack.c.b16 %v1833, %v1829
    %v1982 = vpack.c.b16 %v1834, %v1830
    %v1983 = vpack.c.b16 %v1835, %v1831
    %v1984 = vpack.c.b16 %v1836, %v1832
    %v1985 = vpack.c.b16 %v1841, %v1837
    %v1986 = vpack.c.b16 %v1842, %v1838
    %v1987 = vpack.c.b16 %v1843, %v1839
    %v1988 = vpack.c.b16 %v1844, %v1840
    %v1989 = vpack.c.b16 %v1849, %v1845
    %v1990 = vpack.c.b16 %v1850, %v1846
    %v1991 = vpack.c.b16 %v1851, %v1847
    %v1992 = vpack.c.b16 %v1852, %v1848
    %v1993 = vpack.c.b16 %v1857, %v1853
    %v1994 = vpack.c.b16 %v1858, %v1854
    %v1995 = vpack.c.b16 %v1859, %v1855
    %v1996 = vpack.c.b16 %v1860, %v1856
    %v1997 = vpack.c.b16 %v1865, %v1861
    %v1998 = vpack.c.b16 %v1866, %v1862
    %v1999 = vpack.c.b16 %v1867, %v1863
    %v2000 = vpack.c.b16 %v1868, %v1864
    %v2001 = vpack.c.b16 %v1873, %v1869
    %v2002 = vpack.c.b16 %v1874, %v1870
    %v2003 = vpack.c.b16 %v1875, %v1871
    %v2004 = vpack.c.b16 %v1876, %v1872
    %2133 = vmatprep.subr.bf16.mxu0 %v1906
    %2134 = vmatpush1.bf16.msra.mxu0 %v1905
    %2135 = vmatprep.subr.bf16.mxu0 %v1902
    %2136 = vmatpush1.bf16.msra.mxu0 %v1901
    %2137 = vmatprep.subr.bf16.mxu0 %v1898
    %2138 = vmatpush1.bf16.msra.mxu0 %v1897
    %2139 = vmatprep.subr.bf16.mxu0 %v1894
    %2140 = vmatpush1.bf16.msra.mxu0 %v1893
    %2141 = vmatprep.subr.bf16.mxu0 %v1890
    %2142 = vmatpush1.bf16.msra.mxu0 %v1889
    %2143 = vmatprep.subr.bf16.mxu0 %v1886
    %2144 = vmatpush1.bf16.msra.mxu0 %v1885
    %2145 = vmatprep.subr.bf16.mxu0 %v1882
    %2146 = vmatpush1.bf16.msra.mxu0 %v1881
    %2147 = vmatprep.subr.bf16.mxu0 %v1878
    %2148 = vmatpush1.bf16.msra.mxu0 %v1877
    %2149 = vmatprep.subr.bf16.mxu0 %v1938
    %2150 = vmatpush2.bf16.msra.mxu0 %v1937
    %2151 = vmatprep.subr.bf16.mxu0 %v1934
    %2152 = vmatpush2.bf16.msra.mxu0 %v1933
    %2153 = vmatprep.subr.bf16.mxu0 %v1930
    %2154 = vmatpush2.bf16.msra.mxu0 %v1929
    %2155 = vmatprep.subr.bf16.mxu0 %v1926
    %2156 = vmatpush2.bf16.msra.mxu0 %v1925
    %2157 = vmatprep.subr.bf16.mxu0 %v1922
    %2158 = vmatpush2.bf16.msra.mxu0 %v1921
    %2159 = vmatprep.subr.bf16.mxu0 %v1918
    %2160 = vmatpush2.bf16.msra.mxu0 %v1917
    %2161 = vmatprep.subr.bf16.mxu0 %v1914
    %2162 = vmatpush2.bf16.msra.mxu0 %v1913
    %2163 = vmatprep.subr.bf16.mxu0 %v1910
    %2164 = vmatpush2.bf16.msra.mxu0 %v1909
    %2165 = vmatprep.mubr.bf16.mxu0 %v1340
    %2166 = vmatmul.mubr.bf16.gmra.mxu0 %v1339
    %v2167 = vpop.f32.mrf.mxu0
    %v2168 = vadd.f32 %v1476, %v2167
    %v2169 = vpop.f32.mrf.mxu0
    %v2170 = vadd.f32 %v1480, %v2169
    %v2171 = vpop.f32.mrf.mxu0
    %v2172 = vadd.f32 %v1476, %v2171
    %v2173 = vpop.f32.mrf.mxu0
    %v2174 = vadd.f32 %v1480, %v2173
    %2175 = vdwg.mxu0
    %2176 = vmatprep.subr.bf16.mxu0 %v1970
    %2177 = vmatpush1.bf16.msra.mxu0 %v1969
    %2178 = vmatprep.subr.bf16.mxu0 %v1966
    %2179 = vmatpush1.bf16.msra.mxu0 %v1965
    %2180 = vmatprep.subr.bf16.mxu0 %v1962
    %2181 = vmatpush1.bf16.msra.mxu0 %v1961
    %2182 = vmatprep.subr.bf16.mxu0 %v1958
    %2183 = vmatpush1.bf16.msra.mxu0 %v1957
    %2184 = vmatprep.subr.bf16.mxu0 %v1954
    %2185 = vmatpush1.bf16.msra.mxu0 %v1953
    %2186 = vmatprep.subr.bf16.mxu0 %v1950
    %2187 = vmatpush1.bf16.msra.mxu0 %v1949
    %2188 = vmatprep.subr.bf16.mxu0 %v1946
    %2189 = vmatpush1.bf16.msra.mxu0 %v1945
    %2190 = vmatprep.subr.bf16.mxu0 %v1942
    %2191 = vmatpush1.bf16.msra.mxu0 %v1941
    %2192 = vmatprep.subr.bf16.mxu0 %v2002
    %2193 = vmatpush2.bf16.msra.mxu0 %v2001
    %2194 = vmatprep.subr.bf16.mxu0 %v1998
    %2195 = vmatpush2.bf16.msra.mxu0 %v1997
    %2196 = vmatprep.subr.bf16.mxu0 %v1994
    %2197 = vmatpush2.bf16.msra.mxu0 %v1993
    %2198 = vmatprep.subr.bf16.mxu0 %v1990
    %2199 = vmatpush2.bf16.msra.mxu0 %v1989
    %2200 = vmatprep.subr.bf16.mxu0 %v1986
    %2201 = vmatpush2.bf16.msra.mxu0 %v1985
    %2202 = vmatprep.subr.bf16.mxu0 %v1982
    %2203 = vmatpush2.bf16.msra.mxu0 %v1981
    %2204 = vmatprep.subr.bf16.mxu0 %v1978
    %2205 = vmatpush2.bf16.msra.mxu0 %v1977
    %2206 = vmatprep.subr.bf16.mxu0 %v1974
    %2207 = vmatpush2.bf16.msra.mxu0 %v1973
    %2208 = vmatprep.mubr.bf16.mxu0 %v1342
    %2209 = vmatmul.mubr.bf16.gmra.mxu0 %v1341
    %v2210 = vpop.f32.mrf.mxu0
    %v2211 = vadd.f32 %v2168, %v2210
    %v2212 = vpop.f32.mrf.mxu0
    %v2213 = vadd.f32 %v2170, %v2212
    %v2214 = vpop.f32.mrf.mxu0
    %v2215 = vadd.f32 %v2172, %v2214
    %v2216 = vpop.f32.mrf.mxu0
    %v2217 = vadd.f32 %v2174, %v2216
    %2218 = vdwg.mxu0
    %2219 = vmatprep.subr.bf16.mxu0 %v1908
    %2220 = vmatpush1.bf16.msra.mxu0 %v1907
    %2221 = vmatprep.subr.bf16.mxu0 %v1904
    %2222 = vmatpush1.bf16.msra.mxu0 %v1903
    %2223 = vmatprep.subr.bf16.mxu0 %v1900
    %2224 = vmatpush1.bf16.msra.mxu0 %v1899
    %2225 = vmatprep.subr.bf16.mxu0 %v1896
    %2226 = vmatpush1.bf16.msra.mxu0 %v1895
    %2227 = vmatprep.subr.bf16.mxu0 %v1892
    %2228 = vmatpush1.bf16.msra.mxu0 %v1891
    %2229 = vmatprep.subr.bf16.mxu0 %v1888
    %2230 = vmatpush1.bf16.msra.mxu0 %v1887
    %2231 = vmatprep.subr.bf16.mxu0 %v1884
    %2232 = vmatpush1.bf16.msra.mxu0 %v1883
    %2233 = vmatprep.subr.bf16.mxu0 %v1880
    %2234 = vmatpush1.bf16.msra.mxu0 %v1879
    %2235 = vmatprep.subr.bf16.mxu0 %v1940
    %2236 = vmatpush2.bf16.msra.mxu0 %v1939
    %2237 = vmatprep.subr.bf16.mxu0 %v1936
    %2238 = vmatpush2.bf16.msra.mxu0 %v1935
    %2239 = vmatprep.subr.bf16.mxu0 %v1932
    %2240 = vmatpush2.bf16.msra.mxu0 %v1931
    %2241 = vmatprep.subr.bf16.mxu0 %v1928
    %2242 = vmatpush2.bf16.msra.mxu0 %v1927
    %2243 = vmatprep.subr.bf16.mxu0 %v1924
    %2244 = vmatpush2.bf16.msra.mxu0 %v1923
    %2245 = vmatprep.subr.bf16.mxu0 %v1920
    %2246 = vmatpush2.bf16.msra.mxu0 %v1919
    %2247 = vmatprep.subr.bf16.mxu0 %v1916
    %2248 = vmatpush2.bf16.msra.mxu0 %v1915
    %2249 = vmatprep.subr.bf16.mxu0 %v1912
    %2250 = vmatpush2.bf16.msra.mxu0 %v1911
    %2251 = vmatprep.mubr.bf16.mxu0 %v1340
    %2252 = vmatmul.mubr.bf16.gmra.mxu0 %v1339
    %v2253 = vpop.f32.mrf.mxu0
    %v2254 = vadd.f32 %v1484, %v2253
    %v2255 = vpop.f32.mrf.mxu0
    %v2256 = vadd.f32 %v1488, %v2255
    %v2257 = vpop.f32.mrf.mxu0
    %v2258 = vadd.f32 %v1484, %v2257
    %v2259 = vpop.f32.mrf.mxu0
    %v2260 = vadd.f32 %v1488, %v2259
    %2261 = vdwg.mxu0
    %2262 = vmatprep.subr.bf16.mxu0 %v1972
    %2263 = vmatpush1.bf16.msra.mxu0 %v1971
    %2264 = vmatprep.subr.bf16.mxu0 %v1968
    %2265 = vmatpush1.bf16.msra.mxu0 %v1967
    %2266 = vmatprep.subr.bf16.mxu0 %v1964
    %2267 = vmatpush1.bf16.msra.mxu0 %v1963
    %2268 = vmatprep.subr.bf16.mxu0 %v1960
    %2269 = vmatpush1.bf16.msra.mxu0 %v1959
    %2270 = vmatprep.subr.bf16.mxu0 %v1956
    %2271 = vmatpush1.bf16.msra.mxu0 %v1955
    %2272 = vmatprep.subr.bf16.mxu0 %v1952
    %2273 = vmatpush1.bf16.msra.mxu0 %v1951
    %2274 = vmatprep.subr.bf16.mxu0 %v1948
    %2275 = vmatpush1.bf16.msra.mxu0 %v1947
    %2276 = vmatprep.subr.bf16.mxu0 %v1944
    %2277 = vmatpush1.bf16.msra.mxu0 %v1943
    %2278 = vmatprep.subr.bf16.mxu0 %v2004
    %2279 = vmatpush2.bf16.msra.mxu0 %v2003
    %2280 = vmatprep.subr.bf16.mxu0 %v2000
    %2281 = vmatpush2.bf16.msra.mxu0 %v1999
    %2282 = vmatprep.subr.bf16.mxu0 %v1996
    %2283 = vmatpush2.bf16.msra.mxu0 %v1995
    %2284 = vmatprep.subr.bf16.mxu0 %v1992
    %2285 = vmatpush2.bf16.msra.mxu0 %v1991
    %2286 = vmatprep.subr.bf16.mxu0 %v1988
    %2287 = vmatpush2.bf16.msra.mxu0 %v1987
    %2288 = vmatprep.subr.bf16.mxu0 %v1984
    %2289 = vmatpush2.bf16.msra.mxu0 %v1983
    %2290 = vmatprep.subr.bf16.mxu0 %v1980
    %2291 = vmatpush2.bf16.msra.mxu0 %v1979
    %2292 = vmatprep.subr.bf16.mxu0 %v1976
    %2293 = vmatpush2.bf16.msra.mxu0 %v1975
    %2294 = vmatprep.mubr.bf16.mxu0 %v1342
    %2295 = vmatmul.mubr.bf16.gmra.mxu0 %v1341
    %v2296 = vpop.f32.mrf.mxu0
    %v2297 = vadd.f32 %v2254, %v2296
    %v2298 = vpop.f32.mrf.mxu0
    %v2299 = vadd.f32 %v2256, %v2298
    %v2300 = vpop.f32.mrf.mxu0
    %v2301 = vadd.f32 %v2258, %v2300
    %v2302 = vpop.f32.mrf.mxu0
    %v2303 = vadd.f32 %v2260, %v2302
    %2304 = vdwg.mxu0
    %v2305 = vmax.f32 %v2211, 0.0
    %v2306 = vmax.f32 %v2213, 0.0
    %v2307 = vmax.f32 %v2297, 0.0
    %v2308 = vmax.f32 %v2299, 0.0
    %v2309 = vmax.f32 %v2215, 0.0
    %v2310 = vmax.f32 %v2217, 0.0
    %v2311 = vmax.f32 %v2301, 0.0
    %v2312 = vmax.f32 %v2303, 0.0
    %v2313 = vpack.c.bf16 %v2309, %v2305
    %v2314 = vpack.c.bf16 %v2310, %v2306
    %v2315 = vpack.c.bf16 %v2311, %v2307
    %v2316 = vpack.c.bf16 %v2312, %v2308
    %v2317 = vld [vmem:[#allocation11] sm:$0xf]
    %v2318 = vld [vmem:[#allocation11 + $0x4] sm:$0xf]
    %v2319 = vld [vmem:[#allocation11 + $0x8] sm:$0xf]
    %v2320 = vld [vmem:[#allocation11 + $0xc] sm:$0xf]
    %v2321 = vld [vmem:[#allocation11 + $0x10] sm:$0xf]
    %v2322 = vld [vmem:[#allocation11 + $0x14] sm:$0xf]
    %v2323 = vld [vmem:[#allocation11 + $0x18] sm:$0xf]
    %v2324 = vld [vmem:[#allocation11 + $0x1c] sm:$0xf]
    %v2325 = vld [vmem:[#allocation11 + $0x20] sm:$0xf]
    %v2326 = vld [vmem:[#allocation11 + $0x24] sm:$0xf]
    %v2327 = vld [vmem:[#allocation11 + $0x28] sm:$0xf]
    %v2328 = vld [vmem:[#allocation11 + $0x2c] sm:$0xf]
    %v2329 = vld [vmem:[#allocation11 + $0x30] sm:$0xf]
    %v2330 = vld [vmem:[#allocation11 + $0x34] sm:$0xf]
    %v2331 = vld [vmem:[#allocation11 + $0x38] sm:$0xf]
    %v2332 = vld [vmem:[#allocation11 + $0x3c] sm:$0xf]
    %v2333 = vld [vmem:[#allocation11 + $0x40] sm:$0xf]
    %v2334 = vld [vmem:[#allocation11 + $0x44] sm:$0xf]
    %v2335 = vld [vmem:[#allocation11 + $0x48] sm:$0xf]
    %v2336 = vld [vmem:[#allocation11 + $0x4c] sm:$0xf]
    %v2337 = vld [vmem:[#allocation11 + $0x50] sm:$0xf]
    %v2338 = vld [vmem:[#allocation11 + $0x54] sm:$0xf]
    %v2339 = vld [vmem:[#allocation11 + $0x58] sm:$0xf]
    %v2340 = vld [vmem:[#allocation11 + $0x5c] sm:$0xf]
    %v2341 = vld [vmem:[#allocation11 + $0x60] sm:$0xf]
    %v2342 = vld [vmem:[#allocation11 + $0x64] sm:$0xf]
    %v2343 = vld [vmem:[#allocation11 + $0x68] sm:$0xf]
    %v2344 = vld [vmem:[#allocation11 + $0x6c] sm:$0xf]
    %v2345 = vld [vmem:[#allocation11 + $0x70] sm:$0xf]
    %v2346 = vld [vmem:[#allocation11 + $0x74] sm:$0xf]
    %v2347 = vld [vmem:[#allocation11 + $0x78] sm:$0xf]
    %v2348 = vld [vmem:[#allocation11 + $0x7c] sm:$0xf]
    %v2349 = vld [vmem:[#allocation11 + $0x80] sm:$0xf]
    %v2350 = vld [vmem:[#allocation11 + $0x84] sm:$0xf]
    %v2351 = vld [vmem:[#allocation11 + $0x88] sm:$0xf]
    %v2352 = vld [vmem:[#allocation11 + $0x8c] sm:$0xf]
    %v2353 = vld [vmem:[#allocation11 + $0x90] sm:$0xf]
    %v2354 = vld [vmem:[#allocation11 + $0x94] sm:$0xf]
    %v2355 = vld [vmem:[#allocation11 + $0x98] sm:$0xf]
    %v2356 = vld [vmem:[#allocation11 + $0x9c] sm:$0xf]
    %v2357 = vld [vmem:[#allocation11 + $0xa0] sm:$0xf]
    %v2358 = vld [vmem:[#allocation11 + $0xa4] sm:$0xf]
    %v2359 = vld [vmem:[#allocation11 + $0xa8] sm:$0xf]
    %v2360 = vld [vmem:[#allocation11 + $0xac] sm:$0xf]
    %v2361 = vld [vmem:[#allocation11 + $0xb0] sm:$0xf]
    %v2362 = vld [vmem:[#allocation11 + $0xb4] sm:$0xf]
    %v2363 = vld [vmem:[#allocation11 + $0xb8] sm:$0xf]
    %v2364 = vld [vmem:[#allocation11 + $0xbc] sm:$0xf]
    %v2365 = vld [vmem:[#allocation11 + $0xc0] sm:$0xf]
    %v2366 = vld [vmem:[#allocation11 + $0xc4] sm:$0xf]
    %v2367 = vld [vmem:[#allocation11 + $0xc8] sm:$0xf]
    %v2368 = vld [vmem:[#allocation11 + $0xcc] sm:$0xf]
    %v2369 = vld [vmem:[#allocation11 + $0xd0] sm:$0xf]
    %v2370 = vld [vmem:[#allocation11 + $0xd4] sm:$0xf]
    %v2371 = vld [vmem:[#allocation11 + $0xd8] sm:$0xf]
    %v2372 = vld [vmem:[#allocation11 + $0xdc] sm:$0xf]
    %v2373 = vld [vmem:[#allocation11 + $0xe0] sm:$0xf]
    %v2374 = vld [vmem:[#allocation11 + $0xe4] sm:$0xf]
    %v2375 = vld [vmem:[#allocation11 + $0xe8] sm:$0xf]
    %v2376 = vld [vmem:[#allocation11 + $0xec] sm:$0xf]
    %v2377 = vld [vmem:[#allocation11 + $0xf0] sm:$0xf]
    %v2378 = vld [vmem:[#allocation11 + $0xf4] sm:$0xf]
    %v2379 = vld [vmem:[#allocation11 + $0xf8] sm:$0xf]
    %v2380 = vld [vmem:[#allocation11 + $0xfc] sm:$0xf]
    %v2381 = vld [vmem:[%s8] sm:$0x1]
    %v2383 = vlaneseq
    %v2384 = vshrl.u32 %v2383, 7
    %v2385 = vsub.s32 0, %v2384
    %v2386 = vrot.slane %v2381, %v2385
    %v2452 = vunpack.c.l.b16 %v2317
    %v2453 = vunpack.c.l.b16 %v2318
    %v2454 = vunpack.c.l.b16 %v2319
    %v2455 = vunpack.c.l.b16 %v2320
    %v2456 = vunpack.c.l.b16 %v2321
    %v2457 = vunpack.c.l.b16 %v2322
    %v2458 = vunpack.c.l.b16 %v2323
    %v2459 = vunpack.c.l.b16 %v2324
    %v2460 = vunpack.c.l.b16 %v2325
    %v2461 = vunpack.c.l.b16 %v2326
    %v2462 = vunpack.c.l.b16 %v2327
    %v2463 = vunpack.c.l.b16 %v2328
    %v2464 = vunpack.c.l.b16 %v2329
    %v2465 = vunpack.c.l.b16 %v2330
    %v2466 = vunpack.c.l.b16 %v2331
    %v2467 = vunpack.c.l.b16 %v2332
    %v2468 = vunpack.c.l.b16 %v2333
    %v2469 = vunpack.c.l.b16 %v2334
    %v2470 = vunpack.c.l.b16 %v2335
    %v2471 = vunpack.c.l.b16 %v2336
    %v2472 = vunpack.c.l.b16 %v2337
    %v2473 = vunpack.c.l.b16 %v2338
    %v2474 = vunpack.c.l.b16 %v2339
    %v2475 = vunpack.c.l.b16 %v2340
    %v2476 = vunpack.c.l.b16 %v2341
    %v2477 = vunpack.c.l.b16 %v2342
    %v2478 = vunpack.c.l.b16 %v2343
    %v2479 = vunpack.c.l.b16 %v2344
    %v2480 = vunpack.c.l.b16 %v2345
    %v2481 = vunpack.c.l.b16 %v2346
    %v2482 = vunpack.c.l.b16 %v2347
    %v2483 = vunpack.c.l.b16 %v2348
    %v2484 = vunpack.c.l.b16 %v2349
    %v2485 = vunpack.c.l.b16 %v2350
    %v2486 = vunpack.c.l.b16 %v2351
    %v2487 = vunpack.c.l.b16 %v2352
    %v2488 = vunpack.c.l.b16 %v2353
    %v2489 = vunpack.c.l.b16 %v2354
    %v2490 = vunpack.c.l.b16 %v2355
    %v2491 = vunpack.c.l.b16 %v2356
    %v2492 = vunpack.c.l.b16 %v2357
    %v2493 = vunpack.c.l.b16 %v2358
    %v2494 = vunpack.c.l.b16 %v2359
    %v2495 = vunpack.c.l.b16 %v2360
    %v2496 = vunpack.c.l.b16 %v2361
    %v2497 = vunpack.c.l.b16 %v2362
    %v2498 = vunpack.c.l.b16 %v2363
    %v2499 = vunpack.c.l.b16 %v2364
    %v2500 = vunpack.c.l.b16 %v2365
    %v2501 = vunpack.c.l.b16 %v2366
    %v2502 = vunpack.c.l.b16 %v2367
    %v2503 = vunpack.c.l.b16 %v2368
    %v2504 = vunpack.c.l.b16 %v2369
    %v2505 = vunpack.c.l.b16 %v2370
    %v2506 = vunpack.c.l.b16 %v2371
    %v2507 = vunpack.c.l.b16 %v2372
    %v2508 = vunpack.c.l.b16 %v2373
    %v2509 = vunpack.c.l.b16 %v2374
    %v2510 = vunpack.c.l.b16 %v2375
    %v2511 = vunpack.c.l.b16 %v2376
    %v2512 = vunpack.c.l.b16 %v2377
    %v2513 = vunpack.c.l.b16 %v2378
    %v2514 = vunpack.c.l.b16 %v2379
    %v2515 = vunpack.c.l.b16 %v2380
    %v2516 = vpack.c.b16 %v2453, %v2452
    %v2517 = vpack.c.b16 %v2455, %v2454
    %v2518 = vpack.c.b16 %v2457, %v2456
    %v2519 = vpack.c.b16 %v2459, %v2458
    %v2520 = vpack.c.b16 %v2461, %v2460
    %v2521 = vpack.c.b16 %v2463, %v2462
    %v2522 = vpack.c.b16 %v2465, %v2464
    %v2523 = vpack.c.b16 %v2467, %v2466
    %v2524 = vpack.c.b16 %v2469, %v2468
    %v2525 = vpack.c.b16 %v2471, %v2470
    %v2526 = vpack.c.b16 %v2473, %v2472
    %v2527 = vpack.c.b16 %v2475, %v2474
    %v2528 = vpack.c.b16 %v2477, %v2476
    %v2529 = vpack.c.b16 %v2479, %v2478
    %v2530 = vpack.c.b16 %v2481, %v2480
    %v2531 = vpack.c.b16 %v2483, %v2482
    %v2532 = vpack.c.b16 %v2485, %v2484
    %v2533 = vpack.c.b16 %v2487, %v2486
    %v2534 = vpack.c.b16 %v2489, %v2488
    %v2535 = vpack.c.b16 %v2491, %v2490
    %v2536 = vpack.c.b16 %v2493, %v2492
    %v2537 = vpack.c.b16 %v2495, %v2494
    %v2538 = vpack.c.b16 %v2497, %v2496
    %v2539 = vpack.c.b16 %v2499, %v2498
    %v2540 = vpack.c.b16 %v2501, %v2500
    %v2541 = vpack.c.b16 %v2503, %v2502
    %v2542 = vpack.c.b16 %v2505, %v2504
    %v2543 = vpack.c.b16 %v2507, %v2506
    %v2544 = vpack.c.b16 %v2509, %v2508
    %v2545 = vpack.c.b16 %v2511, %v2510
    %v2546 = vpack.c.b16 %v2513, %v2512
    %v2547 = vpack.c.b16 %v2515, %v2514
    %2580 = vmatprep.subr.bf16.mxu0 0
    %2581 = vmatpush1.bf16.msra.mxu0 %v2523
    %2582 = vmatprep.subr.bf16.mxu0 0
    %2583 = vmatpush1.bf16.msra.mxu0 %v2522
    %2584 = vmatprep.subr.bf16.mxu0 0
    %2585 = vmatpush1.bf16.msra.mxu0 %v2521
    %2586 = vmatprep.subr.bf16.mxu0 0
    %2587 = vmatpush1.bf16.msra.mxu0 %v2520
    %2588 = vmatprep.subr.bf16.mxu0 0
    %2589 = vmatpush1.bf16.msra.mxu0 %v2519
    %2590 = vmatprep.subr.bf16.mxu0 0
    %2591 = vmatpush1.bf16.msra.mxu0 %v2518
    %2592 = vmatprep.subr.bf16.mxu0 0
    %2593 = vmatpush1.bf16.msra.mxu0 %v2517
    %2594 = vmatprep.subr.bf16.mxu0 0
    %2595 = vmatpush1.bf16.msra.mxu0 %v2516
    %2596 = vmatprep.subr.bf16.mxu0 0
    %2597 = vmatpush2.bf16.msra.mxu0 %v2531
    %2598 = vmatprep.subr.bf16.mxu0 0
    %2599 = vmatpush2.bf16.msra.mxu0 %v2530
    %2600 = vmatprep.subr.bf16.mxu0 0
    %2601 = vmatpush2.bf16.msra.mxu0 %v2529
    %2602 = vmatprep.subr.bf16.mxu0 0
    %2603 = vmatpush2.bf16.msra.mxu0 %v2528
    %2604 = vmatprep.subr.bf16.mxu0 0
    %2605 = vmatpush2.bf16.msra.mxu0 %v2527
    %2606 = vmatprep.subr.bf16.mxu0 0
    %2607 = vmatpush2.bf16.msra.mxu0 %v2526
    %2608 = vmatprep.subr.bf16.mxu0 0
    %2609 = vmatpush2.bf16.msra.mxu0 %v2525
    %2610 = vmatprep.subr.bf16.mxu0 0
    %2611 = vmatpush2.bf16.msra.mxu0 %v2524
    %2612 = vmatprep.mubr.bf16.mxu0 %v2314
    %2613 = vmatmul.mubr.bf16.gmra.mxu0 %v2313
    %v2614 = vpop.f32.mrf.mxu0
    %v2615 = vadd.f32 %v2386, %v2614
    %v2616 = vpop.f32.mrf.mxu0
    %v2617 = vpop.f32.mrf.mxu0
    %v2618 = vadd.f32 %v2386, %v2617
    %v2619 = vpop.f32.mrf.mxu0
    %2620 = vdwg.mxu0
    %2621 = vmatprep.subr.bf16.mxu0 0
    %2622 = vmatpush1.bf16.msra.mxu0 %v2539
    %2623 = vmatprep.subr.bf16.mxu0 0
    %2624 = vmatpush1.bf16.msra.mxu0 %v2538
    %2625 = vmatprep.subr.bf16.mxu0 0
    %2626 = vmatpush1.bf16.msra.mxu0 %v2537
    %2627 = vmatprep.subr.bf16.mxu0 0
    %2628 = vmatpush1.bf16.msra.mxu0 %v2536
    %2629 = vmatprep.subr.bf16.mxu0 0
    %2630 = vmatpush1.bf16.msra.mxu0 %v2535
    %2631 = vmatprep.subr.bf16.mxu0 0
    %2632 = vmatpush1.bf16.msra.mxu0 %v2534
    %2633 = vmatprep.subr.bf16.mxu0 0
    %2634 = vmatpush1.bf16.msra.mxu0 %v2533
    %2635 = vmatprep.subr.bf16.mxu0 0
    %2636 = vmatpush1.bf16.msra.mxu0 %v2532
    %2637 = vmatprep.subr.bf16.mxu0 0
    %2638 = vmatpush2.bf16.msra.mxu0 %v2547
    %2639 = vmatprep.subr.bf16.mxu0 0
    %2640 = vmatpush2.bf16.msra.mxu0 %v2546
    %2641 = vmatprep.subr.bf16.mxu0 0
    %2642 = vmatpush2.bf16.msra.mxu0 %v2545
    %2643 = vmatprep.subr.bf16.mxu0 0
    %2644 = vmatpush2.bf16.msra.mxu0 %v2544
    %2645 = vmatprep.subr.bf16.mxu0 0
    %2646 = vmatpush2.bf16.msra.mxu0 %v2543
    %2647 = vmatprep.subr.bf16.mxu0 0
    %2648 = vmatpush2.bf16.msra.mxu0 %v2542
    %2649 = vmatprep.subr.bf16.mxu0 0
    %2650 = vmatpush2.bf16.msra.mxu0 %v2541
    %2651 = vmatprep.subr.bf16.mxu0 0
    %2652 = vmatpush2.bf16.msra.mxu0 %v2540
    %2653 = vmatprep.mubr.bf16.mxu0 %v2316
    %2654 = vmatmul.mubr.bf16.gmra.mxu0 %v2315
    %v2655 = vpop.f32.mrf.mxu0
    %v2656 = vadd.f32 %v2615, %v2655
    %v2657 = vpop.f32.mrf.mxu0
    %v2658 = vpop.f32.mrf.mxu0
    %v2659 = vadd.f32 %v2618, %v2658
    %v2660 = vpop.f32.mrf.mxu0
    %2661 = vdwg.mxu0
    %v2662 = vlaneseq
    %v2663 = vand.u32 %v2662, 127
    %vm2664 = vcmp.ge.s32.totalorder %v2663, 21
    %vm2665 = vcmp.lt.s32.totalorder %v2663, 42
    %vm2666 = vmand %vm2664, %vm2665
    %v2667 = vmax.f32 %v2656, -20.0
    %v2668 = vmax.f32 %v2659, -20.0
    %v2669 = vmin.f32 %v2667, 2.0
    %v2670 = vmin.f32 %v2668, 2.0
    %v2671 = vmul.f32 %v2669, 1.442695
    %v2672 = vpow.pop %v2671
    %v2673 = vmul.f32 %v2670, 1.442695
    %v2674 = vpow.pop %v2673
    %v2675 = vsel %vm2666, %v2672, %v2656
    %v2676 = vsel %vm2666, %v2674, %v2659
    %2677 = vst [vmem:[#allocation13] sm:$0xff] %v2675
    %2678 = vst [vmem:[#allocation13 + $0x8] sm:$0xff] %v2676
    // Predicated region
    $region62: #{tpu_custom_call.1} parent=1 // pred_check
      _
    $region63: #{tpu_custom_call.1} parent=1 // pred_check_branch
      %2680 = sbr.rel (0) target = $region65
    $region64: #{tpu_custom_call.1} parent=1 // pred_region
      %s2682 = ssub.s32 256, 256
      %2683 = vsyncadd [#allocation4], %s2682
      %s2684 = sshll.u32 [#allocation13], 4
      %s2685 = int_to_ptr.vmem [resolvable:$true] %s2684
      %2690 = dma.vmem_to_hbm [thread:$0]  %s2685, 256, %s9, [#allocation4], 128, 128, 8
    $region65: #{tpu_custom_call.1} parent=1 // pred_fallthru
      _
    // Predicated region
    $region66: #{tpu_custom_call.1} parent=1 // pred_check
      _
    $region67: #{tpu_custom_call.1} parent=1 // pred_check_branch
      %2692 = sbr.rel (0) target = $region69
    $region68: #{tpu_custom_call.1} parent=1 // pred_region
      %2693 = dma.done [#allocation4], 256
    $region69: #{tpu_custom_call.1} parent=1 // pred_fallthru
      _
    %2694 = vsyncpa [#allocation3], 1
    %2695 = vsyncpa [#allocation6], 1
    %2696 = vsyncpa [#allocation9], 1
    %2697 = vsyncpa [#allocation12], 1
    %2698 = vsyncpa [#allocation4], 1

</llo_original>
